<compile_context>
chip_gen: v6e
topology: v6e:2x2x1
jax: 0.10.0
libtpu: 0.0.40
codegen_flags: <defaults>
</compile_context>

<pallas_src>
import functools

import numpy as np
import jax
import jax.numpy as jnp
from jax.experimental import pallas as pl
from jax.experimental.pallas import tpu as pltpu

DOT_DTYPE = jnp.bfloat16      # MXU operand dtype (accumulation is always f32)


# ------------------------------ fused kernel -------------------------------

def _lenet5_kernel(xe_ref, xo_ref, w1_ref, b1_ref, w2_ref, wf1_ref, bf1_ref,
                   wf2_ref, bf2_ref, wf3_ref, bf3_ref, o_ref, p1_s, s2_s):
    f32 = jnp.float32
    bt = o_ref.shape[0]          # images in this batch tile
    q1 = bt * 16 - 2             # rows of pooled conv1 map (stacked, 16 / image)
    qe = bt * 8 - 1              # rows of its even / odd H-split
    q2 = bt * 8 - 3              # rows of pooled conv2 map (stacked, 8 / image)

    # conv1 + 2x2 avg-pool, fully folded into 6 weight slabs consumed by
    # shifted-row matmuls over the even/odd input-row streams: 6 MXU dots,
    # no separate pooling pass, no per-slice casts (input is already bf16).
    p1 = b1_ref[...] + jnp.dot(xe_ref[0:q1, :], w1_ref[0],
                               preferred_element_type=f32)
    for k in range(1, 3):
        p1 += jnp.dot(xe_ref[k:k + q1, :], w1_ref[2 * k],
                      preferred_element_type=f32)
    for k in range(3):
        p1 += jnp.dot(xo_ref[k:k + q1, :], w1_ref[2 * k + 1],
                      preferred_element_type=f32)
    p1_s[...] = p1                                           # (q1, 84) f32

    # conv2 + 2x2 avg-pool, same fold.  The H-stride-2 of the pooled map is
    # two strided VMEM reads (even/odd rows), each cast to bf16 once.
    p1e = p1_s[pl.ds(0, qe, stride=2), :].astype(DOT_DTYPE)
    p1o = p1_s[pl.ds(1, qe, stride=2), :].astype(DOT_DTYPE)
    s2 = jnp.dot(p1e[0:q2, :], w2_ref[0], preferred_element_type=f32)
    for k in range(1, 3):
        s2 += jnp.dot(p1e[k:k + q2, :], w2_ref[2 * k],
                      preferred_element_type=f32)
    for k in range(3):
        s2 += jnp.dot(p1o[k:k + q2, :], w2_ref[2 * k + 1],
                      preferred_element_type=f32)
    s2_s[...] = s2                         # (q2, 80) f32; row i*8+u = (img i, h u)

    # pooled-conv2 row gather (stride-8) + NCHW flatten + fc1, fused: per
    # output height u, each image's row hits the matching permuted fc1 slab.
    # (conv2 bias is pre-folded into bf1.)
    z1 = bf1_ref[...] + jnp.dot(
        s2_s[pl.ds(0, bt, stride=8), :].astype(DOT_DTYPE), wf1_ref[0],
        preferred_element_type=f32)
    for u in range(1, 5):
        z1 += jnp.dot(s2_s[pl.ds(u, bt, stride=8), :].astype(DOT_DTYPE),
                      wf1_ref[u], preferred_element_type=f32)
    a1 = jnp.maximum(z1, 0.0).astype(DOT_DTYPE)

    z2 = jnp.dot(a1, wf2_ref[...], preferred_element_type=f32) + bf2_ref[...]
    a2 = jnp.maximum(z2, 0.0).astype(DOT_DTYPE)

    # fc3 into a lane-dense (bt, 128) tile; wrapper slices [:, :10].
    o_ref[...] = (jnp.dot(a2, wf3_ref[...], preferred_element_type=f32)
                  + bf3_ref[...]).astype(o_ref.dtype)


# --------------------------- parameter folding -----------------------------

def _fold_conv_pool(w_oihw, w_in):
    """Fold conv-over-W, the full 2x2 avg-pool factor (0.25), and the pool's
    H-sum into 6 weight slabs consumed by shifted-row matmuls over even/odd
    input-row streams.  Returns (KH+1, w_in*cin, w_pool*cout).  Activation
    lane layout is (W, Cin); output column layout is (W_pooled, Cout)."""
    cout, cin, kh, kw = w_oihw.shape
    w_pool = (w_in - kw + 1) // 2
    u = np.zeros((kw, w_in, w_pool), np.float32)
    for k in range(kw):
        for q in range(w_pool):
            for dx in range(2):
                u[k, 2 * q + dx + k, q] += 0.25          # 2x2 avg-pool factor
    m = jnp.einsum("kwq,ochk->hwcqo", jnp.asarray(u), w_oihw)
    wf = m.reshape(kh, w_in * cin, w_pool * cout)        # KH slabs (W-pool folded)
    zero = jnp.zeros_like(wf[:1])
    wpad = jnp.concatenate([zero, wf, zero], axis=0)
    return wpad[1:] + wpad[:-1]                          # KH+1 slabs (H-sum folded)


def _prepare_operands(params):
    d = DOT_DTYPE
    f32 = jnp.float32
    # fc1: fold the PyTorch NCHW flatten (c*25 + h*5 + w) into per-height
    # slabs whose rows are ordered (w, c) -- matching the kernel's conv2
    # column layout -- and fold the conv2 bias into the fc1 bias.
    f1w = params["f1w"]                                          # (400, 120)
    n1 = f1w.shape[-1]
    wf1 = jnp.transpose(f1w.reshape(16, 5, 5, n1),
                        (1, 2, 0, 3)).reshape(5, 80, n1)
    bf1 = (params["f1b"].reshape(1, -1)
           + jnp.repeat(params["c2b"], 25)[None, :] @ f1w)
    # fc3: pad to 128 lanes for an unmasked, lane-dense output store.
    f3w, f3b = params["f3w"], params["f3b"].reshape(1, -1)
    n3 = f3w.shape[-1]
    wf3 = jnp.zeros((f3w.shape[0], 128), f32).at[:, :n3].set(f3w)
    bf3 = jnp.zeros((1, 128), f32).at[:, :n3].set(f3b)
    return (
        _fold_conv_pool(params["c1w"], 32).astype(d),            # (6, 96, 84)
        jnp.tile(params["c1b"], 14).reshape(1, 84).astype(f32),
        _fold_conv_pool(params["c2w"], 14).astype(d),            # (6, 84, 80)
        wf1.astype(d),                                           # (5, 80, 120)
        bf1.astype(f32),
        params["f2w"].astype(d),
        params["f2b"].reshape(1, -1).astype(f32),
        wf3.astype(d), bf3.astype(f32),
    )


# ------------------------------- entry point --------------------------------

def _pick_batch_tile(b):
    # Large tiles amortize per-step overhead and fill MXU rows; keep >= 2 grid
    # steps when the batch allows so the "parallel" axis can split across the
    # two TensorCores on v7x.
    if b < 32:
        return b
    if b < 64:
        return 16
    return 32


@functools.partial(jax.jit, static_argnames=("batch_tile",))
def lenet5_forward(params, x_nchw, batch_tile=None):
    b, c, h, w = x_nchw.shape
    assert (c, h, w) == (3, 32, 32), "LeNet5 expects CIFAR-10 3x32x32 input"
    bt = _pick_batch_tile(b) if batch_tile is None else batch_tile
    b_pad = -(-b // bt) * bt
    assert bt % 8 == 0 or b_pad == bt     # keep the output block (8,128)-legal
    ops = _prepare_operands(params)

    # NCHW -> NHWC, pad the batch to a tile multiple, split the image rows
    # into even/odd streams (the H half of both 2x2 avg-pools is folded into
    # the conv weights), flatten to batch-stacked rows, ship as bf16.
    x = jnp.transpose(x_nchw, (0, 2, 3, 1))                      # (b, 32, 32, 3)
    if b_pad != b:
        x = jnp.pad(x, ((0, b_pad - b), (0, 0), (0, 0), (0, 0)))
    x = x.reshape(b_pad, 16, 2, 96).astype(DOT_DTYPE)
    xe = x[:, :, 0, :].reshape(b_pad * 16, 96)
    xo = x[:, :, 1, :].reshape(b_pad * 16, 96)

    def full_spec(a):
        nd = a.ndim
        return pl.BlockSpec(a.shape, lambda i, _n=nd: (0,) * _n)

    out = pl.pallas_call(
        _lenet5_kernel,
        out_shape=jax.ShapeDtypeStruct((b_pad, 128), jnp.float32),
        grid=(b_pad // bt,),
        in_specs=[pl.BlockSpec((bt * 16, 96), lambda i: (i, 0)),
                  pl.BlockSpec((bt * 16, 96), lambda i: (i, 0))]
                 + [full_spec(a) for a in ops],
        out_specs=pl.BlockSpec((bt, 128), lambda i: (i, 0)),
        scratch_shapes=[pltpu.VMEM((bt * 16 - 2, 84), jnp.float32),
                        pltpu.VMEM((bt * 8 - 3, 80), jnp.float32)],
        compiler_params=pltpu.CompilerParams(
            dimension_semantics=("parallel",)),
    )(xe, xo, *ops)
    return out[:b, :10]


# ------------------------- pure-JAX f32 reference ---------------------------

def _ref_forward(params, x_nchw):
    def conv(x, wgt, bias):
        y = jax.lax.conv_general_dilated(
            x, wgt, (1, 1), "VALID",
            dimension_numbers=("NCHW", "OIHW", "NCHW"))
        return y + bias.reshape(1, -1, 1, 1)

    def pool(x):
        return 0.25 * (x[:, :, 0::2, 0::2] + x[:, :, 0::2, 1::2]
                       + x[:, :, 1::2, 0::2] + x[:, :, 1::2, 1::2])

    x = pool(conv(x_nchw, params["c1w"], params["c1b"]))
    x = pool(conv(x, params["c2w"], params["c2b"]))
    x = x.reshape(x.shape[0], -1)                   # NCHW flatten == .view(B,400)
    x = jnp.maximum(x @ params["f1w"] + params["f1b"], 0.0)
    x = jnp.maximum(x @ params["f2w"] + params["f2b"], 0.0)
    return x @ params["f3w"] + params["f3b"]


def init_params(key):
    ks = jax.random.split(key, 10)

    def init(k, shape, fan_in):
        return jax.random.normal(k, shape, jnp.float32) / jnp.sqrt(float(fan_in))

    return {
        "c1w": init(ks[0], (6, 3, 5, 5), 3 * 5 * 5),
        "c1b": init(ks[1], (6,), 3 * 5 * 5),
        "c2w": init(ks[2], (16, 6, 5, 5), 6 * 5 * 5),
        "c2b": init(ks[3], (16,), 6 * 5 * 5),
        "f1w": init(ks[4], (400, 120), 400),
        "f1b": init(ks[5], (1, 120), 400),
        "f2w": init(ks[6], (120, 84), 120),
        "f2b": init(ks[7], (1, 84), 120),
        "f3w": init(ks[8], (84, 10), 84),
        "f3b": init(ks[9], (1, 10), 84),
    }


if __name__ == "__main__":
    key = jax.random.PRNGKey(0)
    k_x, k_p = jax.random.split(key)
    # CIFAR-10 shape is required by the 16*5*5 flatten; small batch for the demo.
    x = jax.random.normal(k_x, (2, 3, 32, 32), jnp.float32)
    params = init_params(k_p)

    logits = lenet5_forward(params, x)
    jax.block_until_ready(logits)
    assert logits.shape == (2, 10)

    # Sanity check against a pure-JAX f32 reference (loose tol: bf16 MXU inputs).
    ref = _ref_forward(params, x)
    err = float(jnp.max(jnp.abs(logits - ref)))
    assert err < 0.25, f"max abs error vs reference: {err}"
    print("KERNEL_OK")
</pallas_src>

<mosaic_0001>
module attributes {stable_mosaic.version = 11 : i64} {
  func.func @_lenet5_kernel(%arg0: i32, %arg1: memref<32x96xbf16, #tpu.memory_space<vmem>>, %arg2: memref<32x96xbf16, #tpu.memory_space<vmem>>, %arg3: memref<6x96x84xbf16, #tpu.memory_space<vmem>>, %arg4: memref<1x84xf32, #tpu.memory_space<vmem>>, %arg5: memref<6x84x80xbf16, #tpu.memory_space<vmem>>, %arg6: memref<5x80x120xbf16, #tpu.memory_space<vmem>>, %arg7: memref<1x120xf32, #tpu.memory_space<vmem>>, %arg8: memref<120x84xbf16, #tpu.memory_space<vmem>>, %arg9: memref<1x84xf32, #tpu.memory_space<vmem>>, %arg10: memref<84x128xbf16, #tpu.memory_space<vmem>>, %arg11: memref<1x128xf32, #tpu.memory_space<vmem>>, %arg12: memref<2x128xf32, #tpu.memory_space<vmem>>, %arg13: memref<30x84xf32, #tpu.memory_space<vmem>>, %arg14: memref<13x80xf32, #tpu.memory_space<vmem>>) attributes {dimension_semantics = [#tpu.dimension_semantics<parallel>], iteration_bounds = array<i64: 1>, scalar_prefetch = 0 : i64, scratch_operands = 2 : i64, tpu.core_type = #tpu.core_type<tc>, window_params = [{transform_indices = @transform_0, window_bounds = array<i64: 32, 96>}, {transform_indices = @transform_1, window_bounds = array<i64: 32, 96>}, {pipeline_mode = #tpu.pipeline_mode<synchronous>, transform_indices = @transform_2, window_bounds = array<i64: 6, 96, 84>}, {pipeline_mode = #tpu.pipeline_mode<synchronous>, transform_indices = @transform_3, window_bounds = array<i64: 1, 84>}, {pipeline_mode = #tpu.pipeline_mode<synchronous>, transform_indices = @transform_4, window_bounds = array<i64: 6, 84, 80>}, {pipeline_mode = #tpu.pipeline_mode<synchronous>, transform_indices = @transform_5, window_bounds = array<i64: 5, 80, 120>}, {pipeline_mode = #tpu.pipeline_mode<synchronous>, transform_indices = @transform_6, window_bounds = array<i64: 1, 120>}, {pipeline_mode = #tpu.pipeline_mode<synchronous>, transform_indices = @transform_7, window_bounds = array<i64: 120, 84>}, {pipeline_mode = #tpu.pipeline_mode<synchronous>, transform_indices = @transform_8, window_bounds = array<i64: 1, 84>}, {pipeline_mode = #tpu.pipeline_mode<synchronous>, transform_indices = @transform_9, window_bounds = array<i64: 84, 128>}, {pipeline_mode = #tpu.pipeline_mode<synchronous>, transform_indices = @transform_10, window_bounds = array<i64: 1, 128>}, {transform_indices = @transform_11, window_bounds = array<i64: 2, 128>}]} {
    %c0 = arith.constant 0 : index
    %c0_0 = arith.constant 0 : index
    %0 = vector.load %arg4[%c0, %c0_0] : memref<1x84xf32, #tpu.memory_space<vmem>>, vector<1x84xf32>
    %c0_1 = arith.constant 0 : index
    %c0_2 = arith.constant 0 : index
    %1 = vector.load %arg1[%c0_1, %c0_2] : memref<32x96xbf16, #tpu.memory_space<vmem>>, vector<30x96xbf16>
    %c0_3 = arith.constant 0 : index
    %c0_4 = arith.constant 0 : index
    %c0_5 = arith.constant 0 : index
    %2 = vector.load %arg3[%c0_3, %c0_4, %c0_5] : memref<6x96x84xbf16, #tpu.memory_space<vmem>>, vector<1x96x84xbf16>
    %3 = vector.shape_cast %2 : vector<1x96x84xbf16> to vector<96x84xbf16>
    %cst = arith.constant dense<0.000000e+00> : vector<30x84xf32>
    %4 = tpu.matmul %1, %3, %cst {dimension_numbers = #tpu.dot_dimension_numbers<[1], [0], [0], [1], [0, 0, 1, 1], [], []>} : vector<30x96xbf16>, vector<96x84xbf16>, vector<30x84xf32> -> vector<30x84xf32>
    %5 = vector.broadcast %0 : vector<1x84xf32> to vector<30x84xf32>
    %6 = arith.addf %5, %4 : vector<30x84xf32>
    %c1 = arith.constant 1 : index
    %c0_6 = arith.constant 0 : index
    %7 = vector.load %arg1[%c1, %c0_6] : memref<32x96xbf16, #tpu.memory_space<vmem>>, vector<30x96xbf16>
    %c2 = arith.constant 2 : index
    %c0_7 = arith.constant 0 : index
    %c0_8 = arith.constant 0 : index
    %8 = vector.load %arg3[%c2, %c0_7, %c0_8] : memref<6x96x84xbf16, #tpu.memory_space<vmem>>, vector<1x96x84xbf16>
    %9 = vector.shape_cast %8 : vector<1x96x84xbf16> to vector<96x84xbf16>
    %cst_9 = arith.constant dense<0.000000e+00> : vector<30x84xf32>
    %10 = tpu.matmul %7, %9, %cst_9 {dimension_numbers = #tpu.dot_dimension_numbers<[1], [0], [0], [1], [0, 0, 1, 1], [], []>} : vector<30x96xbf16>, vector<96x84xbf16>, vector<30x84xf32> -> vector<30x84xf32>
    %11 = arith.addf %6, %10 : vector<30x84xf32>
    %c2_10 = arith.constant 2 : index
    %c0_11 = arith.constant 0 : index
    %12 = vector.load %arg1[%c2_10, %c0_11] : memref<32x96xbf16, #tpu.memory_space<vmem>>, vector<30x96xbf16>
    %c4 = arith.constant 4 : index
    %c0_12 = arith.constant 0 : index
    %c0_13 = arith.constant 0 : index
    %13 = vector.load %arg3[%c4, %c0_12, %c0_13] : memref<6x96x84xbf16, #tpu.memory_space<vmem>>, vector<1x96x84xbf16>
    %14 = vector.shape_cast %13 : vector<1x96x84xbf16> to vector<96x84xbf16>
    %cst_14 = arith.constant dense<0.000000e+00> : vector<30x84xf32>
    %15 = tpu.matmul %12, %14, %cst_14 {dimension_numbers = #tpu.dot_dimension_numbers<[1], [0], [0], [1], [0, 0, 1, 1], [], []>} : vector<30x96xbf16>, vector<96x84xbf16>, vector<30x84xf32> -> vector<30x84xf32>
    %16 = arith.addf %11, %15 : vector<30x84xf32>
    %c0_15 = arith.constant 0 : index
    %c0_16 = arith.constant 0 : index
    %17 = vector.load %arg2[%c0_15, %c0_16] : memref<32x96xbf16, #tpu.memory_space<vmem>>, vector<30x96xbf16>
    %c1_17 = arith.constant 1 : index
    %c0_18 = arith.constant 0 : index
    %c0_19 = arith.constant 0 : index
    %18 = vector.load %arg3[%c1_17, %c0_18, %c0_19] : memref<6x96x84xbf16, #tpu.memory_space<vmem>>, vector<1x96x84xbf16>
    %19 = vector.shape_cast %18 : vector<1x96x84xbf16> to vector<96x84xbf16>
    %cst_20 = arith.constant dense<0.000000e+00> : vector<30x84xf32>
    %20 = tpu.matmul %17, %19, %cst_20 {dimension_numbers = #tpu.dot_dimension_numbers<[1], [0], [0], [1], [0, 0, 1, 1], [], []>} : vector<30x96xbf16>, vector<96x84xbf16>, vector<30x84xf32> -> vector<30x84xf32>
    %21 = arith.addf %16, %20 : vector<30x84xf32>
    %c1_21 = arith.constant 1 : index
    %c0_22 = arith.constant 0 : index
    %22 = vector.load %arg2[%c1_21, %c0_22] : memref<32x96xbf16, #tpu.memory_space<vmem>>, vector<30x96xbf16>
    %c3 = arith.constant 3 : index
    %c0_23 = arith.constant 0 : index
    %c0_24 = arith.constant 0 : index
    %23 = vector.load %arg3[%c3, %c0_23, %c0_24] : memref<6x96x84xbf16, #tpu.memory_space<vmem>>, vector<1x96x84xbf16>
    %24 = vector.shape_cast %23 : vector<1x96x84xbf16> to vector<96x84xbf16>
    %cst_25 = arith.constant dense<0.000000e+00> : vector<30x84xf32>
    %25 = tpu.matmul %22, %24, %cst_25 {dimension_numbers = #tpu.dot_dimension_numbers<[1], [0], [0], [1], [0, 0, 1, 1], [], []>} : vector<30x96xbf16>, vector<96x84xbf16>, vector<30x84xf32> -> vector<30x84xf32>
    %26 = arith.addf %21, %25 : vector<30x84xf32>
    %c2_26 = arith.constant 2 : index
    %c0_27 = arith.constant 0 : index
    %27 = vector.load %arg2[%c2_26, %c0_27] : memref<32x96xbf16, #tpu.memory_space<vmem>>, vector<30x96xbf16>
    %c5 = arith.constant 5 : index
    %c0_28 = arith.constant 0 : index
    %c0_29 = arith.constant 0 : index
    %28 = vector.load %arg3[%c5, %c0_28, %c0_29] : memref<6x96x84xbf16, #tpu.memory_space<vmem>>, vector<1x96x84xbf16>
    %29 = vector.shape_cast %28 : vector<1x96x84xbf16> to vector<96x84xbf16>
    %cst_30 = arith.constant dense<0.000000e+00> : vector<30x84xf32>
    %30 = tpu.matmul %27, %29, %cst_30 {dimension_numbers = #tpu.dot_dimension_numbers<[1], [0], [0], [1], [0, 0, 1, 1], [], []>} : vector<30x96xbf16>, vector<96x84xbf16>, vector<30x84xf32> -> vector<30x84xf32>
    %31 = arith.addf %26, %30 : vector<30x84xf32>
    %c0_31 = arith.constant 0 : index
    %c0_32 = arith.constant 0 : index
    %32 = vector.load %arg13[%c0_31, %c0_32] : memref<30x84xf32, #tpu.memory_space<vmem>>, vector<30x84xf32>
    tpu.vector_store %arg13[%c0_31, %c0_32], %31 {strides = array<i32>} : memref<30x84xf32, #tpu.memory_space<vmem>>, vector<30x84xf32>,
    %c0_33 = arith.constant 0 : index
    %c0_34 = arith.constant 0 : index
    %33 = tpu.strided_load %arg13[%c0_33, %c0_34] {strides = array<i32: 2, 1>} : memref<30x84xf32, #tpu.memory_space<vmem>>, vector<15x84xf32>
    %34 = arith.truncf %33 : vector<15x84xf32> to vector<15x84xbf16>
    %c1_35 = arith.constant 1 : index
    %c0_36 = arith.constant 0 : index
    %35 = tpu.strided_load %arg13[%c1_35, %c0_36] {strides = array<i32: 2, 1>} : memref<30x84xf32, #tpu.memory_space<vmem>>, vector<15x84xf32>
    %36 = arith.truncf %35 : vector<15x84xf32> to vector<15x84xbf16>
    %37 = vector.extract_strided_slice %34 {offsets = [0, 0], sizes = [13, 84], strides = [1, 1]} : vector<15x84xbf16> to vector<13x84xbf16>
    %c0_37 = arith.constant 0 : index
    %c0_38 = arith.constant 0 : index
    %c0_39 = arith.constant 0 : index
    %38 = vector.load %arg5[%c0_37, %c0_38, %c0_39] : memref<6x84x80xbf16, #tpu.memory_space<vmem>>, vector<1x84x80xbf16>
    %39 = vector.shape_cast %38 : vector<1x84x80xbf16> to vector<84x80xbf16>
    %cst_40 = arith.constant dense<0.000000e+00> : vector<13x80xf32>
    %40 = tpu.matmul %37, %39, %cst_40 {dimension_numbers = #tpu.dot_dimension_numbers<[1], [0], [0], [1], [0, 0, 1, 1], [], []>} : vector<13x84xbf16>, vector<84x80xbf16>, vector<13x80xf32> -> vector<13x80xf32>
    %41 = vector.extract_strided_slice %34 {offsets = [1, 0], sizes = [13, 84], strides = [1, 1]} : vector<15x84xbf16> to vector<13x84xbf16>
    %c2_41 = arith.constant 2 : index
    %c0_42 = arith.constant 0 : index
    %c0_43 = arith.constant 0 : index
    %42 = vector.load %arg5[%c2_41, %c0_42, %c0_43] : memref<6x84x80xbf16, #tpu.memory_space<vmem>>, vector<1x84x80xbf16>
    %43 = vector.shape_cast %42 : vector<1x84x80xbf16> to vector<84x80xbf16>
    %cst_44 = arith.constant dense<0.000000e+00> : vector<13x80xf32>
    %44 = tpu.matmul %41, %43, %cst_44 {dimension_numbers = #tpu.dot_dimension_numbers<[1], [0], [0], [1], [0, 0, 1, 1], [], []>} : vector<13x84xbf16>, vector<84x80xbf16>, vector<13x80xf32> -> vector<13x80xf32>
    %45 = arith.addf %40, %44 : vector<13x80xf32>
    %46 = vector.extract_strided_slice %34 {offsets = [2, 0], sizes = [13, 84], strides = [1, 1]} : vector<15x84xbf16> to vector<13x84xbf16>
    %c4_45 = arith.constant 4 : index
    %c0_46 = arith.constant 0 : index
    %c0_47 = arith.constant 0 : index
    %47 = vector.load %arg5[%c4_45, %c0_46, %c0_47] : memref<6x84x80xbf16, #tpu.memory_space<vmem>>, vector<1x84x80xbf16>
    %48 = vector.shape_cast %47 : vector<1x84x80xbf16> to vector<84x80xbf16>
    %cst_48 = arith.constant dense<0.000000e+00> : vector<13x80xf32>
    %49 = tpu.matmul %46, %48, %cst_48 {dimension_numbers = #tpu.dot_dimension_numbers<[1], [0], [0], [1], [0, 0, 1, 1], [], []>} : vector<13x84xbf16>, vector<84x80xbf16>, vector<13x80xf32> -> vector<13x80xf32>
    %50 = arith.addf %45, %49 : vector<13x80xf32>
    %51 = vector.extract_strided_slice %36 {offsets = [0, 0], sizes = [13, 84], strides = [1, 1]} : vector<15x84xbf16> to vector<13x84xbf16>
    %c1_49 = arith.constant 1 : index
    %c0_50 = arith.constant 0 : index
    %c0_51 = arith.constant 0 : index
    %52 = vector.load %arg5[%c1_49, %c0_50, %c0_51] : memref<6x84x80xbf16, #tpu.memory_space<vmem>>, vector<1x84x80xbf16>
    %53 = vector.shape_cast %52 : vector<1x84x80xbf16> to vector<84x80xbf16>
    %cst_52 = arith.constant dense<0.000000e+00> : vector<13x80xf32>
    %54 = tpu.matmul %51, %53, %cst_52 {dimension_numbers = #tpu.dot_dimension_numbers<[1], [0], [0], [1], [0, 0, 1, 1], [], []>} : vector<13x84xbf16>, vector<84x80xbf16>, vector<13x80xf32> -> vector<13x80xf32>
    %55 = arith.addf %50, %54 : vector<13x80xf32>
    %56 = vector.extract_strided_slice %36 {offsets = [1, 0], sizes = [13, 84], strides = [1, 1]} : vector<15x84xbf16> to vector<13x84xbf16>
    %c3_53 = arith.constant 3 : index
    %c0_54 = arith.constant 0 : index
    %c0_55 = arith.constant 0 : index
    %57 = vector.load %arg5[%c3_53, %c0_54, %c0_55] : memref<6x84x80xbf16, #tpu.memory_space<vmem>>, vector<1x84x80xbf16>
    %58 = vector.shape_cast %57 : vector<1x84x80xbf16> to vector<84x80xbf16>
    %cst_56 = arith.constant dense<0.000000e+00> : vector<13x80xf32>
    %59 = tpu.matmul %56, %58, %cst_56 {dimension_numbers = #tpu.dot_dimension_numbers<[1], [0], [0], [1], [0, 0, 1, 1], [], []>} : vector<13x84xbf16>, vector<84x80xbf16>, vector<13x80xf32> -> vector<13x80xf32>
    %60 = arith.addf %55, %59 : vector<13x80xf32>
    %61 = vector.extract_strided_slice %36 {offsets = [2, 0], sizes = [13, 84], strides = [1, 1]} : vector<15x84xbf16> to vector<13x84xbf16>
    %c5_57 = arith.constant 5 : index
    %c0_58 = arith.constant 0 : index
    %c0_59 = arith.constant 0 : index
    %62 = vector.load %arg5[%c5_57, %c0_58, %c0_59] : memref<6x84x80xbf16, #tpu.memory_space<vmem>>, vector<1x84x80xbf16>
    %63 = vector.shape_cast %62 : vector<1x84x80xbf16> to vector<84x80xbf16>
    %cst_60 = arith.constant dense<0.000000e+00> : vector<13x80xf32>
    %64 = tpu.matmul %61, %63, %cst_60 {dimension_numbers = #tpu.dot_dimension_numbers<[1], [0], [0], [1], [0, 0, 1, 1], [], []>} : vector<13x84xbf16>, vector<84x80xbf16>, vector<13x80xf32> -> vector<13x80xf32>
    %65 = arith.addf %60, %64 : vector<13x80xf32>
    %c0_61 = arith.constant 0 : index
    %c0_62 = arith.constant 0 : index
    %66 = vector.load %arg14[%c0_61, %c0_62] : memref<13x80xf32, #tpu.memory_space<vmem>>, vector<13x80xf32>
    tpu.vector_store %arg14[%c0_61, %c0_62], %65 {strides = array<i32>} : memref<13x80xf32, #tpu.memory_space<vmem>>, vector<13x80xf32>,
    %c0_63 = arith.constant 0 : index
    %c0_64 = arith.constant 0 : index
    %67 = vector.load %arg7[%c0_63, %c0_64] : memref<1x120xf32, #tpu.memory_space<vmem>>, vector<1x120xf32>
    %c0_65 = arith.constant 0 : index
    %c0_66 = arith.constant 0 : index
    %68 = tpu.strided_load %arg14[%c0_65, %c0_66] {strides = array<i32: 8, 1>} : memref<13x80xf32, #tpu.memory_space<vmem>>, vector<2x80xf32>
    %69 = arith.truncf %68 : vector<2x80xf32> to vector<2x80xbf16>
    %c0_67 = arith.constant 0 : index
    %c0_68 = arith.constant 0 : index
    %c0_69 = arith.constant 0 : index
    %70 = vector.load %arg6[%c0_67, %c0_68, %c0_69] : memref<5x80x120xbf16, #tpu.memory_space<vmem>>, vector<1x80x120xbf16>
    %71 = vector.shape_cast %70 : vector<1x80x120xbf16> to vector<80x120xbf16>
    %cst_70 = arith.constant dense<0.000000e+00> : vector<2x120xf32>
    %72 = tpu.matmul %69, %71, %cst_70 {dimension_numbers = #tpu.dot_dimension_numbers<[1], [0], [0], [1], [0, 0, 1, 1], [], []>} : vector<2x80xbf16>, vector<80x120xbf16>, vector<2x120xf32> -> vector<2x120xf32>
    %73 = vector.broadcast %67 : vector<1x120xf32> to vector<2x120xf32>
    %74 = arith.addf %73, %72 : vector<2x120xf32>
    %c1_71 = arith.constant 1 : index
    %c0_72 = arith.constant 0 : index
    %75 = tpu.strided_load %arg14[%c1_71, %c0_72] {strides = array<i32: 8, 1>} : memref<13x80xf32, #tpu.memory_space<vmem>>, vector<2x80xf32>
    %76 = arith.truncf %75 : vector<2x80xf32> to vector<2x80xbf16>
    %c1_73 = arith.constant 1 : index
    %c0_74 = arith.constant 0 : index
    %c0_75 = arith.constant 0 : index
    %77 = vector.load %arg6[%c1_73, %c0_74, %c0_75] : memref<5x80x120xbf16, #tpu.memory_space<vmem>>, vector<1x80x120xbf16>
    %78 = vector.shape_cast %77 : vector<1x80x120xbf16> to vector<80x120xbf16>
    %cst_76 = arith.constant dense<0.000000e+00> : vector<2x120xf32>
    %79 = tpu.matmul %76, %78, %cst_76 {dimension_numbers = #tpu.dot_dimension_numbers<[1], [0], [0], [1], [0, 0, 1, 1], [], []>} : vector<2x80xbf16>, vector<80x120xbf16>, vector<2x120xf32> -> vector<2x120xf32>
    %80 = arith.addf %74, %79 : vector<2x120xf32>
    %c2_77 = arith.constant 2 : index
    %c0_78 = arith.constant 0 : index
    %81 = tpu.strided_load %arg14[%c2_77, %c0_78] {strides = array<i32: 8, 1>} : memref<13x80xf32, #tpu.memory_space<vmem>>, vector<2x80xf32>
    %82 = arith.truncf %81 : vector<2x80xf32> to vector<2x80xbf16>
    %c2_79 = arith.constant 2 : index
    %c0_80 = arith.constant 0 : index
    %c0_81 = arith.constant 0 : index
    %83 = vector.load %arg6[%c2_79, %c0_80, %c0_81] : memref<5x80x120xbf16, #tpu.memory_space<vmem>>, vector<1x80x120xbf16>
    %84 = vector.shape_cast %83 : vector<1x80x120xbf16> to vector<80x120xbf16>
    %cst_82 = arith.constant dense<0.000000e+00> : vector<2x120xf32>
    %85 = tpu.matmul %82, %84, %cst_82 {dimension_numbers = #tpu.dot_dimension_numbers<[1], [0], [0], [1], [0, 0, 1, 1], [], []>} : vector<2x80xbf16>, vector<80x120xbf16>, vector<2x120xf32> -> vector<2x120xf32>
    %86 = arith.addf %80, %85 : vector<2x120xf32>
    %c3_83 = arith.constant 3 : index
    %c0_84 = arith.constant 0 : index
    %87 = tpu.strided_load %arg14[%c3_83, %c0_84] {strides = array<i32: 8, 1>} : memref<13x80xf32, #tpu.memory_space<vmem>>, vector<2x80xf32>
    %88 = arith.truncf %87 : vector<2x80xf32> to vector<2x80xbf16>
    %c3_85 = arith.constant 3 : index
    %c0_86 = arith.constant 0 : index
    %c0_87 = arith.constant 0 : index
    %89 = vector.load %arg6[%c3_85, %c0_86, %c0_87] : memref<5x80x120xbf16, #tpu.memory_space<vmem>>, vector<1x80x120xbf16>
    %90 = vector.shape_cast %89 : vector<1x80x120xbf16> to vector<80x120xbf16>
    %cst_88 = arith.constant dense<0.000000e+00> : vector<2x120xf32>
    %91 = tpu.matmul %88, %90, %cst_88 {dimension_numbers = #tpu.dot_dimension_numbers<[1], [0], [0], [1], [0, 0, 1, 1], [], []>} : vector<2x80xbf16>, vector<80x120xbf16>, vector<2x120xf32> -> vector<2x120xf32>
    %92 = arith.addf %86, %91 : vector<2x120xf32>
    %c4_89 = arith.constant 4 : index
    %c0_90 = arith.constant 0 : index
    %93 = tpu.strided_load %arg14[%c4_89, %c0_90] {strides = array<i32: 8, 1>} : memref<13x80xf32, #tpu.memory_space<vmem>>, vector<2x80xf32>
    %94 = arith.truncf %93 : vector<2x80xf32> to vector<2x80xbf16>
    %c4_91 = arith.constant 4 : index
    %c0_92 = arith.constant 0 : index
    %c0_93 = arith.constant 0 : index
    %95 = vector.load %arg6[%c4_91, %c0_92, %c0_93] : memref<5x80x120xbf16, #tpu.memory_space<vmem>>, vector<1x80x120xbf16>
    %96 = vector.shape_cast %95 : vector<1x80x120xbf16> to vector<80x120xbf16>
    %cst_94 = arith.constant dense<0.000000e+00> : vector<2x120xf32>
    %97 = tpu.matmul %94, %96, %cst_94 {dimension_numbers = #tpu.dot_dimension_numbers<[1], [0], [0], [1], [0, 0, 1, 1], [], []>} : vector<2x80xbf16>, vector<80x120xbf16>, vector<2x120xf32> -> vector<2x120xf32>
    %98 = arith.addf %92, %97 : vector<2x120xf32>
    %cst_95 = arith.constant 0.000000e+00 : f32
    %99 = vector.broadcast %cst_95 : f32 to vector<2x120xf32>
    %100 = arith.maximumf %98, %99 : vector<2x120xf32>
    %101 = arith.truncf %100 : vector<2x120xf32> to vector<2x120xbf16>
    %c0_96 = arith.constant 0 : index
    %c0_97 = arith.constant 0 : index
    %102 = vector.load %arg8[%c0_96, %c0_97] : memref<120x84xbf16, #tpu.memory_space<vmem>>, vector<120x84xbf16>
    %cst_98 = arith.constant dense<0.000000e+00> : vector<2x84xf32>
    %103 = tpu.matmul %101, %102, %cst_98 {dimension_numbers = #tpu.dot_dimension_numbers<[1], [0], [0], [1], [0, 0, 1, 1], [], []>} : vector<2x120xbf16>, vector<120x84xbf16>, vector<2x84xf32> -> vector<2x84xf32>
    %c0_99 = arith.constant 0 : index
    %c0_100 = arith.constant 0 : index
    %104 = vector.load %arg9[%c0_99, %c0_100] : memref<1x84xf32, #tpu.memory_space<vmem>>, vector<1x84xf32>
    %105 = vector.broadcast %104 : vector<1x84xf32> to vector<2x84xf32>
    %106 = arith.addf %103, %105 : vector<2x84xf32>
    %cst_101 = arith.constant 0.000000e+00 : f32
    %107 = vector.broadcast %cst_101 : f32 to vector<2x84xf32>
    %108 = arith.maximumf %106, %107 : vector<2x84xf32>
    %109 = arith.truncf %108 : vector<2x84xf32> to vector<2x84xbf16>
    %c0_102 = arith.constant 0 : index
    %c0_103 = arith.constant 0 : index
    %110 = vector.load %arg10[%c0_102, %c0_103] : memref<84x128xbf16, #tpu.memory_space<vmem>>, vector<84x128xbf16>
    %cst_104 = arith.constant dense<0.000000e+00> : vector<2x128xf32>
    %111 = tpu.matmul %109, %110, %cst_104 {dimension_numbers = #tpu.dot_dimension_numbers<[1], [0], [0], [1], [0, 0, 1, 1], [], []>} : vector<2x84xbf16>, vector<84x128xbf16>, vector<2x128xf32> -> vector<2x128xf32>
    %c0_105 = arith.constant 0 : index
    %c0_106 = arith.constant 0 : index
    %112 = vector.load %arg11[%c0_105, %c0_106] : memref<1x128xf32, #tpu.memory_space<vmem>>, vector<1x128xf32>
    %113 = vector.broadcast %112 : vector<1x128xf32> to vector<2x128xf32>
    %114 = arith.addf %111, %113 : vector<2x128xf32>
    %c0_107 = arith.constant 0 : index
    %c0_108 = arith.constant 0 : index
    %115 = vector.load %arg12[%c0_107, %c0_108] : memref<2x128xf32, #tpu.memory_space<vmem>>, vector<2x128xf32>
    tpu.vector_store %arg12[%c0_107, %c0_108], %114 {strides = array<i32>} : memref<2x128xf32, #tpu.memory_space<vmem>>, vector<2x128xf32>,
    return
  }
  func.func @transform_0(%arg0: i32) -> (i32, i32) {
    %c0_i32 = arith.constant 0 : i32
    %c0_i32_0 = arith.constant 0 : i32
    return %arg0, %c0_i32 : i32, i32
  }
  func.func @transform_1(%arg0: i32) -> (i32, i32) {
    %c0_i32 = arith.constant 0 : i32
    %c0_i32_0 = arith.constant 0 : i32
    return %arg0, %c0_i32 : i32, i32
  }
  func.func @transform_2(%arg0: i32) -> (i32, i32, i32) {
    %c0_i32 = arith.constant 0 : i32
    %c0_i32_0 = arith.constant 0 : i32
    %c0_i32_1 = arith.constant 0 : i32
    %c0_i32_2 = arith.constant 0 : i32
    return %c0_i32, %c0_i32_0, %c0_i32_1 : i32, i32, i32
  }
  func.func @transform_3(%arg0: i32) -> (i32, i32) {
    %c0_i32 = arith.constant 0 : i32
    %c0_i32_0 = arith.constant 0 : i32
    %c0_i32_1 = arith.constant 0 : i32
    return %c0_i32, %c0_i32_0 : i32, i32
  }
  func.func @transform_4(%arg0: i32) -> (i32, i32, i32) {
    %c0_i32 = arith.constant 0 : i32
    %c0_i32_0 = arith.constant 0 : i32
    %c0_i32_1 = arith.constant 0 : i32
    %c0_i32_2 = arith.constant 0 : i32
    return %c0_i32, %c0_i32_0, %c0_i32_1 : i32, i32, i32
  }
  func.func @transform_5(%arg0: i32) -> (i32, i32, i32) {
    %c0_i32 = arith.constant 0 : i32
    %c0_i32_0 = arith.constant 0 : i32
    %c0_i32_1 = arith.constant 0 : i32
    %c0_i32_2 = arith.constant 0 : i32
    return %c0_i32, %c0_i32_0, %c0_i32_1 : i32, i32, i32
  }
  func.func @transform_6(%arg0: i32) -> (i32, i32) {
    %c0_i32 = arith.constant 0 : i32
    %c0_i32_0 = arith.constant 0 : i32
    %c0_i32_1 = arith.constant 0 : i32
    return %c0_i32, %c0_i32_0 : i32, i32
  }
  func.func @transform_7(%arg0: i32) -> (i32, i32) {
    %c0_i32 = arith.constant 0 : i32
    %c0_i32_0 = arith.constant 0 : i32
    %c0_i32_1 = arith.constant 0 : i32
    return %c0_i32, %c0_i32_0 : i32, i32
  }
  func.func @transform_8(%arg0: i32) -> (i32, i32) {
    %c0_i32 = arith.constant 0 : i32
    %c0_i32_0 = arith.constant 0 : i32
    %c0_i32_1 = arith.constant 0 : i32
    return %c0_i32, %c0_i32_0 : i32, i32
  }
  func.func @transform_9(%arg0: i32) -> (i32, i32) {
    %c0_i32 = arith.constant 0 : i32
    %c0_i32_0 = arith.constant 0 : i32
    %c0_i32_1 = arith.constant 0 : i32
    return %c0_i32, %c0_i32_0 : i32, i32
  }
  func.func @transform_10(%arg0: i32) -> (i32, i32) {
    %c0_i32 = arith.constant 0 : i32
    %c0_i32_0 = arith.constant 0 : i32
    %c0_i32_1 = arith.constant 0 : i32
    return %c0_i32, %c0_i32_0 : i32, i32
  }
  func.func @transform_11(%arg0: i32) -> (i32, i32) {
    %c0_i32 = arith.constant 0 : i32
    %c0_i32_0 = arith.constant 0 : i32
    return %arg0, %c0_i32 : i32, i32
  }
}

</mosaic_0001>

<llo_original>
// kernel: tile.8
$region0: #{tile.8}
  #allocation0 [shape = 's32[1]{0}', space=sflag, size = 0x4, scoped, tag = 'scoped memory for tile.8']
  %s0 = inlined_call_operand.vmem [shape: f32[6], index: 0, kind: input, shape index: {}]
  %s1 = inlined_call_operand.vmem [shape: f32[14,6], index: 1, kind: output, shape index: {}]
  // Predicated region
  $region2: #{tile.8} parent=0 // pred_check
    _
  $region3: #{tile.8} parent=0 // pred_check_branch
    %3 = sbr.rel (0) target = $region5
  $region4: #{tile.8} parent=0 // pred_region
    _
  $region5: #{tile.8} parent=0 // pred_fallthru
    _
  %v4 = vld [vmem:[%s0] ss:$0 sm:$0xff]
  %5 = vst [vmem:[%s1] sm:$0xff] %v4
  %s6 = scalar_lea.vmem %s1, 8
  %7 = vst [vmem:[%s6] sm:$0xff] %v4

// kernel: tile.9
$region0: #{tile.9}
  %s0 = inlined_call_operand.vmem [shape: f32[14,6], index: 0, kind: input, shape index: {}]
  %s1 = inlined_call_operand.vmem [shape: f32[1,84], index: 1, kind: output, shape index: {}]
  $region1: #{tile.9} parent=0
    #allocation0 [shape = 'u8[4096]{0}', space=vmem, size = 0x1000, scoped, tag = 'scoped mem for output reshape']
    %v2 = vld [vmem:[%s0] sm:$0x1]
    %vm3 = vcmask 48128
    %4 = vst.msk [vmem:[#allocation0] sm:$0x1] %vm3, %v2
    %s5 = scalar_lea.vmem %s0, 13
    %v6 = vld [vmem:[%s5] sm:$0x1]
    %7 = vrot.lane.b32.xlu0 %v6, 78
    %v8 = vpop.permute.xlu0 %7
    %vm9 = vcmask 687728
    %10 = vst.msk [vmem:[#allocation0] sm:$0x1] %vm9, %v8
    %s11 = scalar_lea.vmem %s0, 12
    %v12 = vld [vmem:[%s11] sm:$0x1]
    %13 = vrot.lane.b32.xlu0 %v12, 72
    %v14 = vpop.permute.xlu0 %13
    %vm15 = vcmask 638528
    %16 = vst.msk [vmem:[#allocation0] sm:$0x1] %vm15, %v14
    %s17 = scalar_lea.vmem %s0, 11
    %v18 = vld [vmem:[%s17] sm:$0x1]
    %19 = vrot.lane.b32.xlu0 %v18, 66
    %v20 = vpop.permute.xlu0 %19
    %vm21 = vcmask 589328
    %22 = vst.msk [vmem:[#allocation0] sm:$0x1] %vm21, %v20
    %s23 = scalar_lea.vmem %s0, 10
    %v24 = vld [vmem:[%s23] sm:$0x1]
    %25 = vrot.lane.b32.xlu0 %v24, 60
    %v26 = vpop.permute.xlu0 %25
    %vm27 = vcmask 540128
    %28 = vst.msk [vmem:[#allocation0] sm:$0x1] %vm27, %v26
    %s29 = scalar_lea.vmem %s0, 9
    %v30 = vld [vmem:[%s29] sm:$0x1]
    %31 = vrot.lane.b32.xlu0 %v30, 54
    %v32 = vpop.permute.xlu0 %31
    %vm33 = vcmask 490928
    %34 = vst.msk [vmem:[#allocation0] sm:$0x1] %vm33, %v32
    %s35 = scalar_lea.vmem %s0, 8
    %v36 = vld [vmem:[%s35] sm:$0x1]
    %37 = vrot.lane.b32.xlu0 %v36, 48
    %v38 = vpop.permute.xlu0 %37
    %vm39 = vcmask 441728
    %40 = vst.msk [vmem:[#allocation0] sm:$0x1] %vm39, %v38
    %s41 = scalar_lea.vmem %s0, 7
    %v42 = vld [vmem:[%s41] sm:$0x1]
    %43 = vrot.lane.b32.xlu0 %v42, 42
    %v44 = vpop.permute.xlu0 %43
    %vm45 = vcmask 392528
    %46 = vst.msk [vmem:[#allocation0] sm:$0x1] %vm45, %v44
    %s47 = scalar_lea.vmem %s0, 6
    %v48 = vld [vmem:[%s47] sm:$0x1]
    %49 = vrot.lane.b32.xlu0 %v48, 36
    %v50 = vpop.permute.xlu0 %49
    %vm51 = vcmask 343328
    %52 = vst.msk [vmem:[#allocation0] sm:$0x1] %vm51, %v50
    %s53 = scalar_lea.vmem %s0, 5
    %v54 = vld [vmem:[%s53] sm:$0x1]
    %55 = vrot.lane.b32.xlu0 %v54, 30
    %v56 = vpop.permute.xlu0 %55
    %vm57 = vcmask 294128
    %58 = vst.msk [vmem:[#allocation0] sm:$0x1] %vm57, %v56
    %s59 = scalar_lea.vmem %s0, 4
    %v60 = vld [vmem:[%s59] sm:$0x1]
    %61 = vrot.lane.b32.xlu0 %v60, 24
    %v62 = vpop.permute.xlu0 %61
    %vm63 = vcmask 244928
    %64 = vst.msk [vmem:[#allocation0] sm:$0x1] %vm63, %v62
    %s65 = scalar_lea.vmem %s0, 3
    %v66 = vld [vmem:[%s65] sm:$0x1]
    %67 = vrot.lane.b32.xlu0 %v66, 18
    %v68 = vpop.permute.xlu0 %67
    %vm69 = vcmask 195728
    %70 = vst.msk [vmem:[#allocation0] sm:$0x1] %vm69, %v68
    %s71 = scalar_lea.vmem %s0, 2
    %v72 = vld [vmem:[%s71] sm:$0x1]
    %73 = vrot.lane.b32.xlu0 %v72, 12
    %v74 = vpop.permute.xlu0 %73
    %vm75 = vcmask 146528
    %76 = vst.msk [vmem:[#allocation0] sm:$0x1] %vm75, %v74
    %s77 = scalar_lea.vmem %s0, 1
    %v78 = vld [vmem:[%s77] sm:$0x1]
    %79 = vrot.lane.b32.xlu0 %v78, 6
    %v80 = vpop.permute.xlu0 %79
    %vm81 = vcmask 97328
    %82 = vst.msk [vmem:[#allocation0] sm:$0x1] %vm81, %v80
    %s84 = sshll.u32 1, 1
    %s85 = ssub.s32 %s84, 1
    %v87 = vld [vmem:[#allocation0] sm:%s85]
    %s88 = sshll.u32 1, 1
    %s89 = ssub.s32 %s88, 1
    %90 = vst [vmem:[%s1] sm:%s89] %v87

// kernel: lenet5_forward.1
$region0: #{lenet5_forward.1}
  #allocation0 [shape = 'u32[]', space=smem, size = 0x4, offset = 0x4, fixed_abs, tag = 'smem constant byte address 0x4 - core index']
  #allocation1 [shape = 'u32[144,128]{1,0:T(1,128)}', space=vmem, size = 0x12000, scoped, tag = 'internal scratch']
  #allocation2 [shape = 'f32[30,84]{1,0:T(8,128)}', space=vmem, size = 0x4000, scoped, tag = 'scratch operand']
  #allocation3 [shape = 'f32[13,80]{1,0:T(8,128)}', space=vmem, size = 0x2000, scoped, tag = 'scratch operand']
  %s0 = inlined_call_operand.vmem [shape: bf16[32,96], index: 0, kind: input, shape index: {}]
  %s1 = inlined_call_operand.vmem [shape: bf16[32,96], index: 1, kind: input, shape index: {}]
  %s2 = inlined_call_operand.vmem [shape: bf16[6,96,84], index: 2, kind: input, shape index: {}]
  %s3 = inlined_call_operand.vmem [shape: f32[1,84], index: 3, kind: input, shape index: {}]
  %s4 = inlined_call_operand.vmem [shape: bf16[6,84,80], index: 4, kind: input, shape index: {}]
  %s5 = inlined_call_operand.vmem [shape: bf16[5,80,120], index: 5, kind: input, shape index: {}]
  %s6 = inlined_call_operand.vmem [shape: f32[1,120], index: 6, kind: input, shape index: {}]
  %s7 = inlined_call_operand.vmem [shape: bf16[120,84], index: 7, kind: input, shape index: {}]
  %s8 = inlined_call_operand.vmem [shape: f32[1,84], index: 8, kind: input, shape index: {}]
  %s9 = inlined_call_operand.vmem [shape: bf16[84,128], index: 9, kind: input, shape index: {}]
  %s10 = inlined_call_operand.vmem [shape: f32[1,128], index: 10, kind: input, shape index: {}]
  %s11 = inlined_call_operand.hbm [shape: f32[2,128], index: 11, kind: output, shape index: {}]
  %s12 = sld [smem:[#allocation0]]
  $region54: #{lenet5_forward.1} parent=0
    _
  %s14 = ssub.s32 1, %s12
  %s15 = scalar_select 0, %s14, %s12
  $region1: #{lenet5_forward.1} parent=0
    #allocation4 [shape = 'u8[1024]{0}', space=vmem, size = 0x400, scoped, tag = 'output window, operand 0, single buffered']
    #allocation5 [shape = 's32[1]{0}', space=sflag, size = 0x4, scoped, tag = 'scoped memory for lenet5_forward.1']
    %16 = vsyncpa [#allocation5], 0
    // Predicated region
    $region2: #{lenet5_forward.1} parent=1 // pred_check
      _
    $region3: #{lenet5_forward.1} parent=1 // pred_check_branch
      %18 = sbr.rel (0) target = $region5
    $region4: #{lenet5_forward.1} parent=1 // pred_region
      _
    $region5: #{lenet5_forward.1} parent=1 // pred_fallthru
      _
    // Predicated region
    $region6: #{lenet5_forward.1} parent=1 // pred_check
      _
    $region7: #{lenet5_forward.1} parent=1 // pred_check_branch
      %20 = sbr.rel (0) target = $region9
    $region8: #{lenet5_forward.1} parent=1 // pred_region
      _
    $region9: #{lenet5_forward.1} parent=1 // pred_fallthru
      _
    // Predicated region
    $region10: #{lenet5_forward.1} parent=1 // pred_check
      _
    $region11: #{lenet5_forward.1} parent=1 // pred_check_branch
      %22 = sbr.rel (0) target = $region13
    $region12: #{lenet5_forward.1} parent=1 // pred_region
      _
    $region13: #{lenet5_forward.1} parent=1 // pred_fallthru
      _
    // Predicated region
    $region14: #{lenet5_forward.1} parent=1 // pred_check
      _
    $region15: #{lenet5_forward.1} parent=1 // pred_check_branch
      %24 = sbr.rel (0) target = $region17
    $region16: #{lenet5_forward.1} parent=1 // pred_region
      _
    $region17: #{lenet5_forward.1} parent=1 // pred_fallthru
      _
    // Predicated region
    $region18: #{lenet5_forward.1} parent=1 // pred_check
      _
    $region19: #{lenet5_forward.1} parent=1 // pred_check_branch
      %26 = sbr.rel (0) target = $region21
    $region20: #{lenet5_forward.1} parent=1 // pred_region
      _
    $region21: #{lenet5_forward.1} parent=1 // pred_fallthru
      _
    // Predicated region
    $region22: #{lenet5_forward.1} parent=1 // pred_check
      _
    $region23: #{lenet5_forward.1} parent=1 // pred_check_branch
      %28 = sbr.rel (0) target = $region25
    $region24: #{lenet5_forward.1} parent=1 // pred_region
      _
    $region25: #{lenet5_forward.1} parent=1 // pred_fallthru
      _
    // Predicated region
    $region26: #{lenet5_forward.1} parent=1 // pred_check
      _
    $region27: #{lenet5_forward.1} parent=1 // pred_check_branch
      %30 = sbr.rel (0) target = $region29
    $region28: #{lenet5_forward.1} parent=1 // pred_region
      _
    $region29: #{lenet5_forward.1} parent=1 // pred_fallthru
      _
    // Predicated region
    $region30: #{lenet5_forward.1} parent=1 // pred_check
      _
    $region31: #{lenet5_forward.1} parent=1 // pred_check_branch
      %32 = sbr.rel (0) target = $region33
    $region32: #{lenet5_forward.1} parent=1 // pred_region
      _
    $region33: #{lenet5_forward.1} parent=1 // pred_fallthru
      _
    // Predicated region
    $region34: #{lenet5_forward.1} parent=1 // pred_check
      _
    $region35: #{lenet5_forward.1} parent=1 // pred_check_branch
      %34 = sbr.rel (0) target = $region37
    $region36: #{lenet5_forward.1} parent=1 // pred_region
      _
    $region37: #{lenet5_forward.1} parent=1 // pred_fallthru
      _
    // Predicated region
    $region38: #{lenet5_forward.1} parent=1 // pred_check
      _
    $region39: #{lenet5_forward.1} parent=1 // pred_check_branch
      %36 = sbr.rel (0) target = $region41
    $region40: #{lenet5_forward.1} parent=1 // pred_region
      _
    $region41: #{lenet5_forward.1} parent=1 // pred_fallthru
      _
    // Predicated region
    $region42: #{lenet5_forward.1} parent=1 // pred_check
      _
    $region43: #{lenet5_forward.1} parent=1 // pred_check_branch
      %38 = sbr.rel (0) target = $region45
    $region44: #{lenet5_forward.1} parent=1 // pred_region
      _
    $region45: #{lenet5_forward.1} parent=1 // pred_fallthru
      _
    %v40 = vld [vmem:[%s3] sm:$0x1]
    %v41 = vld [vmem:[%s0] sm:$0xf]
    %v42 = vld [vmem:[%s0 + $0x4] sm:$0xf]
    %v43 = vld [vmem:[%s0 + $0x8] sm:$0xf]
    %v44 = vld [vmem:[%s0 + $0xc] sm:$0x7]
    %v45 = vld [vmem:[%s2] sm:$0xf]
    %v46 = vld [vmem:[%s2 + $0x4] sm:$0xf]
    %v47 = vld [vmem:[%s2 + $0x8] sm:$0xf]
    %v48 = vld [vmem:[%s2 + $0xc] sm:$0xf]
    %v49 = vld [vmem:[%s2 + $0x10] sm:$0xf]
    %v50 = vld [vmem:[%s2 + $0x14] sm:$0xf]
    %v51 = vld [vmem:[%s2 + $0x18] sm:$0xf]
    %v52 = vld [vmem:[%s2 + $0x1c] sm:$0xf]
    %v53 = vld [vmem:[%s2 + $0x20] sm:$0xf]
    %v54 = vld [vmem:[%s2 + $0x24] sm:$0xf]
    %v55 = vld [vmem:[%s2 + $0x28] sm:$0xf]
    %v56 = vld [vmem:[%s2 + $0x2c] sm:$0xf]
    %v61 = vunpack.c.l.b16 %v41
    %v62 = vunpack.c.l.b16 %v42
    %v63 = vunpack.c.l.b16 %v43
    %v64 = vunpack.c.l.b16 %v44
    %v65 = vpack.c.b16 %v62, %v61
    %v66 = vpack.c.b16 %v64, %v63
    %v79 = vunpack.c.l.b16 %v45
    %v80 = vunpack.c.l.b16 %v46
    %v81 = vunpack.c.l.b16 %v47
    %v82 = vunpack.c.l.b16 %v48
    %v83 = vunpack.c.l.b16 %v49
    %v84 = vunpack.c.l.b16 %v50
    %v85 = vunpack.c.l.b16 %v51
    %v86 = vunpack.c.l.b16 %v52
    %v87 = vunpack.c.l.b16 %v53
    %v88 = vunpack.c.l.b16 %v54
    %v89 = vunpack.c.l.b16 %v55
    %v90 = vunpack.c.l.b16 %v56
    %v91 = vpack.c.b16 %v80, %v79
    %v92 = vpack.c.b16 %v82, %v81
    %v93 = vpack.c.b16 %v84, %v83
    %v94 = vpack.c.b16 %v86, %v85
    %v95 = vpack.c.b16 %v88, %v87
    %v96 = vpack.c.b16 %v90, %v89
    %vm103 = vcmask 785408
    %v105 = vsel %vm103, %v65, 0
    %v108 = vsel %vm103, %v66, 0
    %110 = vmatprep.subr.bf16.mxu0 0
    %111 = vmatpush1.bf16.msra.mxu0 0
    %112 = vmatprep.subr.bf16.mxu0 0
    %113 = vmatpush1.bf16.msra.mxu0 0
    %114 = vmatprep.subr.bf16.mxu0 0
    %115 = vmatpush1.bf16.msra.mxu0 %v96
    %116 = vmatprep.subr.bf16.mxu0 0
    %117 = vmatpush1.bf16.msra.mxu0 %v95
    %118 = vmatprep.subr.bf16.mxu0 0
    %119 = vmatpush1.bf16.msra.mxu0 %v94
    %120 = vmatprep.subr.bf16.mxu0 0
    %121 = vmatpush1.bf16.msra.mxu0 %v93
    %122 = vmatprep.subr.bf16.mxu0 0
    %123 = vmatpush1.bf16.msra.mxu0 %v92
    %124 = vmatprep.subr.bf16.mxu0 0
    %125 = vmatpush1.bf16.msra.mxu0 %v91
    %126 = vmatprep.subr.bf16.mxu0 0
    %127 = vmatpush2.bf16.msra.mxu0 0
    %128 = vmatprep.subr.bf16.mxu0 0
    %129 = vmatpush2.bf16.msra.mxu0 0
    %130 = vmatprep.subr.bf16.mxu0 0
    %131 = vmatpush2.bf16.msra.mxu0 0
    %132 = vmatprep.subr.bf16.mxu0 0
    %133 = vmatpush2.bf16.msra.mxu0 0
    %134 = vmatprep.subr.bf16.mxu0 0
    %135 = vmatpush2.bf16.msra.mxu0 0
    %136 = vmatprep.subr.bf16.mxu0 0
    %137 = vmatpush2.bf16.msra.mxu0 0
    %138 = vmatprep.subr.bf16.mxu0 0
    %139 = vmatpush2.bf16.msra.mxu0 0
    %140 = vmatprep.subr.bf16.mxu0 0
    %141 = vmatpush2.bf16.msra.mxu0 0
    %142 = vmatprep.mubr.bf16.mxu0 0
    %143 = vmatmul.mubr.bf16.gmra.mxu0 %v105
    %v144 = vpop.f32.mrf.mxu0
    %v145 = vadd.f32 0.0, %v144
    %v146 = vpop.f32.mrf.mxu0
    %v147 = vpop.f32.mrf.mxu0
    %v148 = vadd.f32 0.0, %v147
    %v149 = vpop.f32.mrf.mxu0
    %150 = vmatprep.mubr.bf16.mxu0 0
    %151 = vmatmul.mubr.bf16.gmra.mxu0 %v108
    %v152 = vpop.f32.mrf.mxu0
    %v153 = vadd.f32 0.0, %v152
    %v154 = vpop.f32.mrf.mxu0
    %v155 = vpop.f32.mrf.mxu0
    %v156 = vadd.f32 0.0, %v155
    %v157 = vpop.f32.mrf.mxu0
    %158 = vdwg.mxu0
    %v160 = vlaneseq
    %v161 = vshrl.u32 %v160, 7
    %v162 = vsub.s32 0, %v161
    %v163 = vrot.slane %v40, %v162
    %v165 = vadd.f32 %v163, %v145
    %v166 = vadd.f32 %v163, %v148
    %v167 = vadd.f32 %v163, %v153
    %v168 = vadd.f32 %v163, %v156
    %v169 = vld [vmem:[%s0 + $0xc] sm:$0xf]
    %s170 = scalar_lea.vmem %s2, 96
    %v171 = vld [vmem:[%s170] sm:$0xf]
    %v172 = vld [vmem:[%s170 + $0x4] sm:$0xf]
    %v173 = vld [vmem:[%s170 + $0x8] sm:$0xf]
    %v174 = vld [vmem:[%s170 + $0xc] sm:$0xf]
    %v175 = vld [vmem:[%s170 + $0x10] sm:$0xf]
    %v176 = vld [vmem:[%s170 + $0x14] sm:$0xf]
    %v177 = vld [vmem:[%s170 + $0x18] sm:$0xf]
    %v178 = vld [vmem:[%s170 + $0x1c] sm:$0xf]
    %v179 = vld [vmem:[%s170 + $0x20] sm:$0xf]
    %v180 = vld [vmem:[%s170 + $0x24] sm:$0xf]
    %v181 = vld [vmem:[%s170 + $0x28] sm:$0xf]
    %v182 = vld [vmem:[%s170 + $0x2c] sm:$0xf]
    %v184 = vunpack.c.l.b16 %v169
    %v185 = vpack.c.b16 %v184, %v63
    %vm186 = vsmask.f32 7424
    %v187 = vshrl.u32 %v65, 16
    %v189 = vshll.u32 %v65, 16
    %v191 = vrot.slane %v189, 1
    %v192 = vor.u32 %v187, %v191
    %v194 = vshll.u32 %v185, 16
    %v196 = vrot.slane %v194, 1
    %v197 = vsel %vm186, %v192, %v196
    %v198 = vshrl.u32 %v185, 16
    %v200 = vor.u32 %v198, %v196
    %v213 = vunpack.c.l.b16 %v171
    %v214 = vunpack.c.l.b16 %v172
    %v215 = vunpack.c.l.b16 %v173
    %v216 = vunpack.c.l.b16 %v174
    %v217 = vunpack.c.l.b16 %v175
    %v218 = vunpack.c.l.b16 %v176
    %v219 = vunpack.c.l.b16 %v177
    %v220 = vunpack.c.l.b16 %v178
    %v221 = vunpack.c.l.b16 %v179
    %v222 = vunpack.c.l.b16 %v180
    %v223 = vunpack.c.l.b16 %v181
    %v224 = vunpack.c.l.b16 %v182
    %v225 = vpack.c.b16 %v214, %v213
    %v226 = vpack.c.b16 %v216, %v215
    %v227 = vpack.c.b16 %v218, %v217
    %v228 = vpack.c.b16 %v220, %v219
    %v229 = vpack.c.b16 %v222, %v221
    %v230 = vpack.c.b16 %v224, %v223
    %v238 = vsel %vm103, %v197, 0
    %v241 = vsel %vm103, %v200, 0
    %243 = vmatprep.subr.bf16.mxu0 0
    %244 = vmatpush1.bf16.msra.mxu0 0
    %245 = vmatprep.subr.bf16.mxu0 0
    %246 = vmatpush1.bf16.msra.mxu0 0
    %247 = vmatprep.subr.bf16.mxu0 0
    %248 = vmatpush1.bf16.msra.mxu0 %v230
    %249 = vmatprep.subr.bf16.mxu0 0
    %250 = vmatpush1.bf16.msra.mxu0 %v229
    %251 = vmatprep.subr.bf16.mxu0 0
    %252 = vmatpush1.bf16.msra.mxu0 %v228
    %253 = vmatprep.subr.bf16.mxu0 0
    %254 = vmatpush1.bf16.msra.mxu0 %v227
    %255 = vmatprep.subr.bf16.mxu0 0
    %256 = vmatpush1.bf16.msra.mxu0 %v226
    %257 = vmatprep.subr.bf16.mxu0 0
    %258 = vmatpush1.bf16.msra.mxu0 %v225
    %259 = vmatprep.subr.bf16.mxu0 0
    %260 = vmatpush2.bf16.msra.mxu0 0
    %261 = vmatprep.subr.bf16.mxu0 0
    %262 = vmatpush2.bf16.msra.mxu0 0
    %263 = vmatprep.subr.bf16.mxu0 0
    %264 = vmatpush2.bf16.msra.mxu0 0
    %265 = vmatprep.subr.bf16.mxu0 0
    %266 = vmatpush2.bf16.msra.mxu0 0
    %267 = vmatprep.subr.bf16.mxu0 0
    %268 = vmatpush2.bf16.msra.mxu0 0
    %269 = vmatprep.subr.bf16.mxu0 0
    %270 = vmatpush2.bf16.msra.mxu0 0
    %271 = vmatprep.subr.bf16.mxu0 0
    %272 = vmatpush2.bf16.msra.mxu0 0
    %273 = vmatprep.subr.bf16.mxu0 0
    %274 = vmatpush2.bf16.msra.mxu0 0
    %275 = vmatprep.mubr.bf16.mxu0 0
    %276 = vmatmul.mubr.bf16.gmra.mxu0 %v238
    %v277 = vpop.f32.mrf.mxu0
    %v278 = vadd.f32 0.0, %v277
    %v279 = vpop.f32.mrf.mxu0
    %v280 = vpop.f32.mrf.mxu0
    %v281 = vadd.f32 0.0, %v280
    %v282 = vpop.f32.mrf.mxu0
    %283 = vmatprep.mubr.bf16.mxu0 0
    %284 = vmatmul.mubr.bf16.gmra.mxu0 %v241
    %v285 = vpop.f32.mrf.mxu0
    %v286 = vadd.f32 0.0, %v285
    %v287 = vpop.f32.mrf.mxu0
    %v288 = vpop.f32.mrf.mxu0
    %v289 = vadd.f32 0.0, %v288
    %v290 = vpop.f32.mrf.mxu0
    %291 = vdwg.mxu0
    %v292 = vadd.f32 %v165, %v278
    %v293 = vadd.f32 %v166, %v281
    %v294 = vadd.f32 %v167, %v286
    %v295 = vadd.f32 %v168, %v289
    %v296 = vld [vmem:[%s0] sm:$0xe]
    %s297 = scalar_lea.vmem %s2, 192
    %v298 = vld [vmem:[%s297] sm:$0xf]
    %v299 = vld [vmem:[%s297 + $0x4] sm:$0xf]
    %v300 = vld [vmem:[%s297 + $0x8] sm:$0xf]
    %v301 = vld [vmem:[%s297 + $0xc] sm:$0xf]
    %v302 = vld [vmem:[%s297 + $0x10] sm:$0xf]
    %v303 = vld [vmem:[%s297 + $0x14] sm:$0xf]
    %v304 = vld [vmem:[%s297 + $0x18] sm:$0xf]
    %v305 = vld [vmem:[%s297 + $0x1c] sm:$0xf]
    %v306 = vld [vmem:[%s297 + $0x20] sm:$0xf]
    %v307 = vld [vmem:[%s297 + $0x24] sm:$0xf]
    %v308 = vld [vmem:[%s297 + $0x28] sm:$0xf]
    %v309 = vld [vmem:[%s297 + $0x2c] sm:$0xf]
    %v311 = vunpack.c.l.b16 %v296
    %v312 = vpack.c.b16 %v62, %v311
    %vm313 = vcmask 1046528
    %v314 = vrot.slane %v312, 1
    %v315 = vrot.slane %v185, 1
    %v316 = vsel %vm313, %v314, %v315
    %v329 = vunpack.c.l.b16 %v298
    %v330 = vunpack.c.l.b16 %v299
    %v331 = vunpack.c.l.b16 %v300
    %v332 = vunpack.c.l.b16 %v301
    %v333 = vunpack.c.l.b16 %v302
    %v334 = vunpack.c.l.b16 %v303
    %v335 = vunpack.c.l.b16 %v304
    %v336 = vunpack.c.l.b16 %v305
    %v337 = vunpack.c.l.b16 %v306
    %v338 = vunpack.c.l.b16 %v307
    %v339 = vunpack.c.l.b16 %v308
    %v340 = vunpack.c.l.b16 %v309
    %v341 = vpack.c.b16 %v330, %v329
    %v342 = vpack.c.b16 %v332, %v331
    %v343 = vpack.c.b16 %v334, %v333
    %v344 = vpack.c.b16 %v336, %v335
    %v345 = vpack.c.b16 %v338, %v337
    %v346 = vpack.c.b16 %v340, %v339
    %v354 = vsel %vm103, %v316, 0
    %v357 = vsel %vm103, %v315, 0
    %359 = vmatprep.subr.bf16.mxu0 0
    %360 = vmatpush1.bf16.msra.mxu0 0
    %361 = vmatprep.subr.bf16.mxu0 0
    %362 = vmatpush1.bf16.msra.mxu0 0
    %363 = vmatprep.subr.bf16.mxu0 0
    %364 = vmatpush1.bf16.msra.mxu0 %v346
    %365 = vmatprep.subr.bf16.mxu0 0
    %366 = vmatpush1.bf16.msra.mxu0 %v345
    %367 = vmatprep.subr.bf16.mxu0 0
    %368 = vmatpush1.bf16.msra.mxu0 %v344
    %369 = vmatprep.subr.bf16.mxu0 0
    %370 = vmatpush1.bf16.msra.mxu0 %v343
    %371 = vmatprep.subr.bf16.mxu0 0
    %372 = vmatpush1.bf16.msra.mxu0 %v342
    %373 = vmatprep.subr.bf16.mxu0 0
    %374 = vmatpush1.bf16.msra.mxu0 %v341
    %375 = vmatprep.subr.bf16.mxu0 0
    %376 = vmatpush2.bf16.msra.mxu0 0
    %377 = vmatprep.subr.bf16.mxu0 0
    %378 = vmatpush2.bf16.msra.mxu0 0
    %379 = vmatprep.subr.bf16.mxu0 0
    %380 = vmatpush2.bf16.msra.mxu0 0
    %381 = vmatprep.subr.bf16.mxu0 0
    %382 = vmatpush2.bf16.msra.mxu0 0
    %383 = vmatprep.subr.bf16.mxu0 0
    %384 = vmatpush2.bf16.msra.mxu0 0
    %385 = vmatprep.subr.bf16.mxu0 0
    %386 = vmatpush2.bf16.msra.mxu0 0
    %387 = vmatprep.subr.bf16.mxu0 0
    %388 = vmatpush2.bf16.msra.mxu0 0
    %389 = vmatprep.subr.bf16.mxu0 0
    %390 = vmatpush2.bf16.msra.mxu0 0
    %391 = vmatprep.mubr.bf16.mxu0 0
    %392 = vmatmul.mubr.bf16.gmra.mxu0 %v354
    %v393 = vpop.f32.mrf.mxu0
    %v394 = vadd.f32 0.0, %v393
    %v395 = vpop.f32.mrf.mxu0
    %v396 = vpop.f32.mrf.mxu0
    %v397 = vadd.f32 0.0, %v396
    %v398 = vpop.f32.mrf.mxu0
    %399 = vmatprep.mubr.bf16.mxu0 0
    %400 = vmatmul.mubr.bf16.gmra.mxu0 %v357
    %v401 = vpop.f32.mrf.mxu0
    %v402 = vadd.f32 0.0, %v401
    %v403 = vpop.f32.mrf.mxu0
    %v404 = vpop.f32.mrf.mxu0
    %v405 = vadd.f32 0.0, %v404
    %v406 = vpop.f32.mrf.mxu0
    %407 = vdwg.mxu0
    %v408 = vadd.f32 %v292, %v394
    %v409 = vadd.f32 %v293, %v397
    %v410 = vadd.f32 %v294, %v402
    %v411 = vadd.f32 %v295, %v405
    %v412 = vld [vmem:[%s1] sm:$0xf]
    %v413 = vld [vmem:[%s1 + $0x4] sm:$0xf]
    %v414 = vld [vmem:[%s1 + $0x8] sm:$0xf]
    %v415 = vld [vmem:[%s1 + $0xc] sm:$0x7]
    %s416 = scalar_lea.vmem %s2, 48
    %v417 = vld [vmem:[%s416] sm:$0xf]
    %v418 = vld [vmem:[%s416 + $0x4] sm:$0xf]
    %v419 = vld [vmem:[%s416 + $0x8] sm:$0xf]
    %v420 = vld [vmem:[%s416 + $0xc] sm:$0xf]
    %v421 = vld [vmem:[%s416 + $0x10] sm:$0xf]
    %v422 = vld [vmem:[%s416 + $0x14] sm:$0xf]
    %v423 = vld [vmem:[%s416 + $0x18] sm:$0xf]
    %v424 = vld [vmem:[%s416 + $0x1c] sm:$0xf]
    %v425 = vld [vmem:[%s416 + $0x20] sm:$0xf]
    %v426 = vld [vmem:[%s416 + $0x24] sm:$0xf]
    %v427 = vld [vmem:[%s416 + $0x28] sm:$0xf]
    %v428 = vld [vmem:[%s416 + $0x2c] sm:$0xf]
    %v433 = vunpack.c.l.b16 %v412
    %v434 = vunpack.c.l.b16 %v413
    %v435 = vunpack.c.l.b16 %v414
    %v436 = vunpack.c.l.b16 %v415
    %v437 = vpack.c.b16 %v434, %v433
    %v438 = vpack.c.b16 %v436, %v435
    %v451 = vunpack.c.l.b16 %v417
    %v452 = vunpack.c.l.b16 %v418
    %v453 = vunpack.c.l.b16 %v419
    %v454 = vunpack.c.l.b16 %v420
    %v455 = vunpack.c.l.b16 %v421
    %v456 = vunpack.c.l.b16 %v422
    %v457 = vunpack.c.l.b16 %v423
    %v458 = vunpack.c.l.b16 %v424
    %v459 = vunpack.c.l.b16 %v425
    %v460 = vunpack.c.l.b16 %v426
    %v461 = vunpack.c.l.b16 %v427
    %v462 = vunpack.c.l.b16 %v428
    %v463 = vpack.c.b16 %v452, %v451
    %v464 = vpack.c.b16 %v454, %v453
    %v465 = vpack.c.b16 %v456, %v455
    %v466 = vpack.c.b16 %v458, %v457
    %v467 = vpack.c.b16 %v460, %v459
    %v468 = vpack.c.b16 %v462, %v461
    %v476 = vsel %vm103, %v437, 0
    %v479 = vsel %vm103, %v438, 0
    %481 = vmatprep.subr.bf16.mxu0 0
    %482 = vmatpush1.bf16.msra.mxu0 0
    %483 = vmatprep.subr.bf16.mxu0 0
    %484 = vmatpush1.bf16.msra.mxu0 0
    %485 = vmatprep.subr.bf16.mxu0 0
    %486 = vmatpush1.bf16.msra.mxu0 %v468
    %487 = vmatprep.subr.bf16.mxu0 0
    %488 = vmatpush1.bf16.msra.mxu0 %v467
    %489 = vmatprep.subr.bf16.mxu0 0
    %490 = vmatpush1.bf16.msra.mxu0 %v466
    %491 = vmatprep.subr.bf16.mxu0 0
    %492 = vmatpush1.bf16.msra.mxu0 %v465
    %493 = vmatprep.subr.bf16.mxu0 0
    %494 = vmatpush1.bf16.msra.mxu0 %v464
    %495 = vmatprep.subr.bf16.mxu0 0
    %496 = vmatpush1.bf16.msra.mxu0 %v463
    %497 = vmatprep.subr.bf16.mxu0 0
    %498 = vmatpush2.bf16.msra.mxu0 0
    %499 = vmatprep.subr.bf16.mxu0 0
    %500 = vmatpush2.bf16.msra.mxu0 0
    %501 = vmatprep.subr.bf16.mxu0 0
    %502 = vmatpush2.bf16.msra.mxu0 0
    %503 = vmatprep.subr.bf16.mxu0 0
    %504 = vmatpush2.bf16.msra.mxu0 0
    %505 = vmatprep.subr.bf16.mxu0 0
    %506 = vmatpush2.bf16.msra.mxu0 0
    %507 = vmatprep.subr.bf16.mxu0 0
    %508 = vmatpush2.bf16.msra.mxu0 0
    %509 = vmatprep.subr.bf16.mxu0 0
    %510 = vmatpush2.bf16.msra.mxu0 0
    %511 = vmatprep.subr.bf16.mxu0 0
    %512 = vmatpush2.bf16.msra.mxu0 0
    %513 = vmatprep.mubr.bf16.mxu0 0
    %514 = vmatmul.mubr.bf16.gmra.mxu0 %v476
    %v515 = vpop.f32.mrf.mxu0
    %v516 = vadd.f32 0.0, %v515
    %v517 = vpop.f32.mrf.mxu0
    %v518 = vpop.f32.mrf.mxu0
    %v519 = vadd.f32 0.0, %v518
    %v520 = vpop.f32.mrf.mxu0
    %521 = vmatprep.mubr.bf16.mxu0 0
    %522 = vmatmul.mubr.bf16.gmra.mxu0 %v479
    %v523 = vpop.f32.mrf.mxu0
    %v524 = vadd.f32 0.0, %v523
    %v525 = vpop.f32.mrf.mxu0
    %v526 = vpop.f32.mrf.mxu0
    %v527 = vadd.f32 0.0, %v526
    %v528 = vpop.f32.mrf.mxu0
    %529 = vdwg.mxu0
    %v530 = vadd.f32 %v408, %v516
    %v531 = vadd.f32 %v409, %v519
    %v532 = vadd.f32 %v410, %v524
    %v533 = vadd.f32 %v411, %v527
    %v534 = vld [vmem:[%s1 + $0xc] sm:$0xf]
    %s535 = scalar_lea.vmem %s2, 144
    %v536 = vld [vmem:[%s535] sm:$0xf]
    %v537 = vld [vmem:[%s535 + $0x4] sm:$0xf]
    %v538 = vld [vmem:[%s535 + $0x8] sm:$0xf]
    %v539 = vld [vmem:[%s535 + $0xc] sm:$0xf]
    %v540 = vld [vmem:[%s535 + $0x10] sm:$0xf]
    %v541 = vld [vmem:[%s535 + $0x14] sm:$0xf]
    %v542 = vld [vmem:[%s535 + $0x18] sm:$0xf]
    %v543 = vld [vmem:[%s535 + $0x1c] sm:$0xf]
    %v544 = vld [vmem:[%s535 + $0x20] sm:$0xf]
    %v545 = vld [vmem:[%s535 + $0x24] sm:$0xf]
    %v546 = vld [vmem:[%s535 + $0x28] sm:$0xf]
    %v547 = vld [vmem:[%s535 + $0x2c] sm:$0xf]
    %v549 = vunpack.c.l.b16 %v534
    %v550 = vpack.c.b16 %v549, %v435
    %v551 = vshrl.u32 %v437, 16
    %v553 = vshll.u32 %v437, 16
    %v555 = vrot.slane %v553, 1
    %v556 = vor.u32 %v551, %v555
    %v558 = vshll.u32 %v550, 16
    %v560 = vrot.slane %v558, 1
    %v561 = vsel %vm186, %v556, %v560
    %v562 = vshrl.u32 %v550, 16
    %v564 = vor.u32 %v562, %v560
    %v577 = vunpack.c.l.b16 %v536
    %v578 = vunpack.c.l.b16 %v537
    %v579 = vunpack.c.l.b16 %v538
    %v580 = vunpack.c.l.b16 %v539
    %v581 = vunpack.c.l.b16 %v540
    %v582 = vunpack.c.l.b16 %v541
    %v583 = vunpack.c.l.b16 %v542
    %v584 = vunpack.c.l.b16 %v543
    %v585 = vunpack.c.l.b16 %v544
    %v586 = vunpack.c.l.b16 %v545
    %v587 = vunpack.c.l.b16 %v546
    %v588 = vunpack.c.l.b16 %v547
    %v589 = vpack.c.b16 %v578, %v577
    %v590 = vpack.c.b16 %v580, %v579
    %v591 = vpack.c.b16 %v582, %v581
    %v592 = vpack.c.b16 %v584, %v583
    %v593 = vpack.c.b16 %v586, %v585
    %v594 = vpack.c.b16 %v588, %v587
    %v602 = vsel %vm103, %v561, 0
    %v605 = vsel %vm103, %v564, 0
    %607 = vmatprep.subr.bf16.mxu0 0
    %608 = vmatpush1.bf16.msra.mxu0 0
    %609 = vmatprep.subr.bf16.mxu0 0
    %610 = vmatpush1.bf16.msra.mxu0 0
    %611 = vmatprep.subr.bf16.mxu0 0
    %612 = vmatpush1.bf16.msra.mxu0 %v594
    %613 = vmatprep.subr.bf16.mxu0 0
    %614 = vmatpush1.bf16.msra.mxu0 %v593
    %615 = vmatprep.subr.bf16.mxu0 0
    %616 = vmatpush1.bf16.msra.mxu0 %v592
    %617 = vmatprep.subr.bf16.mxu0 0
    %618 = vmatpush1.bf16.msra.mxu0 %v591
    %619 = vmatprep.subr.bf16.mxu0 0
    %620 = vmatpush1.bf16.msra.mxu0 %v590
    %621 = vmatprep.subr.bf16.mxu0 0
    %622 = vmatpush1.bf16.msra.mxu0 %v589
    %623 = vmatprep.subr.bf16.mxu0 0
    %624 = vmatpush2.bf16.msra.mxu0 0
    %625 = vmatprep.subr.bf16.mxu0 0
    %626 = vmatpush2.bf16.msra.mxu0 0
    %627 = vmatprep.subr.bf16.mxu0 0
    %628 = vmatpush2.bf16.msra.mxu0 0
    %629 = vmatprep.subr.bf16.mxu0 0
    %630 = vmatpush2.bf16.msra.mxu0 0
    %631 = vmatprep.subr.bf16.mxu0 0
    %632 = vmatpush2.bf16.msra.mxu0 0
    %633 = vmatprep.subr.bf16.mxu0 0
    %634 = vmatpush2.bf16.msra.mxu0 0
    %635 = vmatprep.subr.bf16.mxu0 0
    %636 = vmatpush2.bf16.msra.mxu0 0
    %637 = vmatprep.subr.bf16.mxu0 0
    %638 = vmatpush2.bf16.msra.mxu0 0
    %639 = vmatprep.mubr.bf16.mxu0 0
    %640 = vmatmul.mubr.bf16.gmra.mxu0 %v602
    %v641 = vpop.f32.mrf.mxu0
    %v642 = vadd.f32 0.0, %v641
    %v643 = vpop.f32.mrf.mxu0
    %v644 = vpop.f32.mrf.mxu0
    %v645 = vadd.f32 0.0, %v644
    %v646 = vpop.f32.mrf.mxu0
    %647 = vmatprep.mubr.bf16.mxu0 0
    %648 = vmatmul.mubr.bf16.gmra.mxu0 %v605
    %v649 = vpop.f32.mrf.mxu0
    %v650 = vadd.f32 0.0, %v649
    %v651 = vpop.f32.mrf.mxu0
    %v652 = vpop.f32.mrf.mxu0
    %v653 = vadd.f32 0.0, %v652
    %v654 = vpop.f32.mrf.mxu0
    %655 = vdwg.mxu0
    %v656 = vadd.f32 %v530, %v642
    %v657 = vadd.f32 %v531, %v645
    %v658 = vadd.f32 %v532, %v650
    %v659 = vadd.f32 %v533, %v653
    %v660 = vld [vmem:[%s1] sm:$0xe]
    %s661 = scalar_lea.vmem %s2, 240
    %v662 = vld [vmem:[%s661] sm:$0xf]
    %v663 = vld [vmem:[%s661 + $0x4] sm:$0xf]
    %v664 = vld [vmem:[%s661 + $0x8] sm:$0xf]
    %v665 = vld [vmem:[%s661 + $0xc] sm:$0xf]
    %v666 = vld [vmem:[%s661 + $0x10] sm:$0xf]
    %v667 = vld [vmem:[%s661 + $0x14] sm:$0xf]
    %v668 = vld [vmem:[%s661 + $0x18] sm:$0xf]
    %v669 = vld [vmem:[%s661 + $0x1c] sm:$0xf]
    %v670 = vld [vmem:[%s661 + $0x20] sm:$0xf]
    %v671 = vld [vmem:[%s661 + $0x24] sm:$0xf]
    %v672 = vld [vmem:[%s661 + $0x28] sm:$0xf]
    %v673 = vld [vmem:[%s661 + $0x2c] sm:$0xf]
    %v675 = vunpack.c.l.b16 %v660
    %v676 = vpack.c.b16 %v434, %v675
    %v677 = vrot.slane %v676, 1
    %v678 = vrot.slane %v550, 1
    %v679 = vsel %vm313, %v677, %v678
    %v692 = vunpack.c.l.b16 %v662
    %v693 = vunpack.c.l.b16 %v663
    %v694 = vunpack.c.l.b16 %v664
    %v695 = vunpack.c.l.b16 %v665
    %v696 = vunpack.c.l.b16 %v666
    %v697 = vunpack.c.l.b16 %v667
    %v698 = vunpack.c.l.b16 %v668
    %v699 = vunpack.c.l.b16 %v669
    %v700 = vunpack.c.l.b16 %v670
    %v701 = vunpack.c.l.b16 %v671
    %v702 = vunpack.c.l.b16 %v672
    %v703 = vunpack.c.l.b16 %v673
    %v704 = vpack.c.b16 %v693, %v692
    %v705 = vpack.c.b16 %v695, %v694
    %v706 = vpack.c.b16 %v697, %v696
    %v707 = vpack.c.b16 %v699, %v698
    %v708 = vpack.c.b16 %v701, %v700
    %v709 = vpack.c.b16 %v703, %v702
    %v717 = vsel %vm103, %v679, 0
    %v720 = vsel %vm103, %v678, 0
    %722 = vmatprep.subr.bf16.mxu0 0
    %723 = vmatpush1.bf16.msra.mxu0 0
    %724 = vmatprep.subr.bf16.mxu0 0
    %725 = vmatpush1.bf16.msra.mxu0 0
    %726 = vmatprep.subr.bf16.mxu0 0
    %727 = vmatpush1.bf16.msra.mxu0 %v709
    %728 = vmatprep.subr.bf16.mxu0 0
    %729 = vmatpush1.bf16.msra.mxu0 %v708
    %730 = vmatprep.subr.bf16.mxu0 0
    %731 = vmatpush1.bf16.msra.mxu0 %v707
    %732 = vmatprep.subr.bf16.mxu0 0
    %733 = vmatpush1.bf16.msra.mxu0 %v706
    %734 = vmatprep.subr.bf16.mxu0 0
    %735 = vmatpush1.bf16.msra.mxu0 %v705
    %736 = vmatprep.subr.bf16.mxu0 0
    %737 = vmatpush1.bf16.msra.mxu0 %v704
    %738 = vmatprep.subr.bf16.mxu0 0
    %739 = vmatpush2.bf16.msra.mxu0 0
    %740 = vmatprep.subr.bf16.mxu0 0
    %741 = vmatpush2.bf16.msra.mxu0 0
    %742 = vmatprep.subr.bf16.mxu0 0
    %743 = vmatpush2.bf16.msra.mxu0 0
    %744 = vmatprep.subr.bf16.mxu0 0
    %745 = vmatpush2.bf16.msra.mxu0 0
    %746 = vmatprep.subr.bf16.mxu0 0
    %747 = vmatpush2.bf16.msra.mxu0 0
    %748 = vmatprep.subr.bf16.mxu0 0
    %749 = vmatpush2.bf16.msra.mxu0 0
    %750 = vmatprep.subr.bf16.mxu0 0
    %751 = vmatpush2.bf16.msra.mxu0 0
    %752 = vmatprep.subr.bf16.mxu0 0
    %753 = vmatpush2.bf16.msra.mxu0 0
    %754 = vmatprep.mubr.bf16.mxu0 0
    %755 = vmatmul.mubr.bf16.gmra.mxu0 %v717
    %v756 = vpop.f32.mrf.mxu0
    %v757 = vadd.f32 0.0, %v756
    %v758 = vpop.f32.mrf.mxu0
    %v759 = vpop.f32.mrf.mxu0
    %v760 = vadd.f32 0.0, %v759
    %v761 = vpop.f32.mrf.mxu0
    %762 = vmatprep.mubr.bf16.mxu0 0
    %763 = vmatmul.mubr.bf16.gmra.mxu0 %v720
    %v764 = vpop.f32.mrf.mxu0
    %v765 = vadd.f32 0.0, %v764
    %v766 = vpop.f32.mrf.mxu0
    %v767 = vpop.f32.mrf.mxu0
    %v768 = vadd.f32 0.0, %v767
    %v769 = vpop.f32.mrf.mxu0
    %770 = vdwg.mxu0
    %v771 = vadd.f32 %v656, %v757
    %v772 = vadd.f32 %v657, %v760
    %v773 = vadd.f32 %v658, %v765
    %v774 = vadd.f32 %v659, %v768
    %vm775 = vcmask 687104
    %776 = vst.msk [vmem:[#allocation2] sm:$0xff] %vm775, %v771
    %777 = vst.msk [vmem:[#allocation2 + $0x8] sm:$0xff] %vm775, %v772
    %778 = vst.msk [vmem:[#allocation2 + $0x10] sm:$0xff] %vm775, %v773
    %vm779 = vcmask 685056
    %780 = vst.msk [vmem:[#allocation2 + $0x18] sm:$0x3f] %vm779, %v774
    %v781 = vld [vmem:[#allocation2] ss:$2 sm:$0xff]
    %s782 = scalar_lea.vmem [#allocation2], 16
    %v783 = vld [vmem:[%s782] ss:$2 sm:$0x7f]
    %v784 = vpack.c.bf16 %v783, %v781
    %s785 = scalar_lea.vmem [#allocation2], 1
    %v786 = vld [vmem:[%s785] ss:$2 sm:$0xff]
    %s787 = scalar_lea.vmem [#allocation2], 17
    %v788 = vld [vmem:[%s787] ss:$2 sm:$0x7f]
    %v789 = vpack.c.bf16 %v788, %v786
    %v790 = vld [vmem:[%s4] sm:$0xf]
    %v791 = vld [vmem:[%s4 + $0x4] sm:$0xf]
    %v792 = vld [vmem:[%s4 + $0x8] sm:$0xf]
    %v793 = vld [vmem:[%s4 + $0xc] sm:$0xf]
    %v794 = vld [vmem:[%s4 + $0x10] sm:$0xf]
    %v795 = vld [vmem:[%s4 + $0x14] sm:$0xf]
    %v796 = vld [vmem:[%s4 + $0x18] sm:$0xf]
    %v797 = vld [vmem:[%s4 + $0x1c] sm:$0xf]
    %v798 = vld [vmem:[%s4 + $0x20] sm:$0xf]
    %v799 = vld [vmem:[%s4 + $0x24] sm:$0xf]
    %v800 = vld [vmem:[%s4 + $0x28] sm:$0x3]
    %s801 = scalar_lea.vmem %s4, 88
    %v802 = vld [vmem:[%s801] sm:$0xf]
    %v803 = vld [vmem:[%s801 + $0x4] sm:$0xf]
    %v804 = vld [vmem:[%s801 + $0x8] sm:$0xf]
    %v805 = vld [vmem:[%s801 + $0xc] sm:$0xf]
    %v806 = vld [vmem:[%s801 + $0x10] sm:$0xf]
    %v807 = vld [vmem:[%s801 + $0x14] sm:$0xf]
    %v808 = vld [vmem:[%s801 + $0x18] sm:$0xf]
    %v809 = vld [vmem:[%s801 + $0x1c] sm:$0xf]
    %v810 = vld [vmem:[%s801 + $0x20] sm:$0xf]
    %v811 = vld [vmem:[%s801 + $0x24] sm:$0xf]
    %v812 = vld [vmem:[%s801 + $0x28] sm:$0x3]
    %v814 = vshrl.u32 %v784, 16
    %v816 = vshll.u32 %v784, 16
    %v818 = vrot.slane %v816, 1
    %v819 = vor.u32 %v814, %v818
    %v831 = vunpack.c.l.b16 %v802
    %v832 = vunpack.c.l.b16 %v803
    %v833 = vunpack.c.l.b16 %v804
    %v834 = vunpack.c.l.b16 %v805
    %v835 = vunpack.c.l.b16 %v806
    %v836 = vunpack.c.l.b16 %v807
    %v837 = vunpack.c.l.b16 %v808
    %v838 = vunpack.c.l.b16 %v809
    %v839 = vunpack.c.l.b16 %v810
    %v840 = vunpack.c.l.b16 %v811
    %v841 = vunpack.c.l.b16 %v812
    %v842 = vpack.c.b16 %v832, %v831
    %v843 = vpack.c.b16 %v834, %v833
    %v844 = vpack.c.b16 %v836, %v835
    %v845 = vpack.c.b16 %v838, %v837
    %v846 = vpack.c.b16 %v840, %v839
    %v847 = vpack.c.b16 %v841, %v841
    %v854 = vsel %vm775, %v819, 0
    %vm856 = vcmask 1041408
    %v858 = vsel %vm856, %v847, 0
    %860 = vmatprep.subr.bf16.mxu0 0
    %861 = vmatpush1.bf16.msra.mxu0 0
    %862 = vmatprep.subr.bf16.mxu0 0
    %863 = vmatpush1.bf16.msra.mxu0 0
    %864 = vmatprep.subr.bf16.mxu0 0
    %865 = vmatpush1.bf16.msra.mxu0 %v858
    %866 = vmatprep.subr.bf16.mxu0 0
    %867 = vmatpush1.bf16.msra.mxu0 %v846
    %868 = vmatprep.subr.bf16.mxu0 0
    %869 = vmatpush1.bf16.msra.mxu0 %v845
    %870 = vmatprep.subr.bf16.mxu0 0
    %871 = vmatpush1.bf16.msra.mxu0 %v844
    %872 = vmatprep.subr.bf16.mxu0 0
    %873 = vmatpush1.bf16.msra.mxu0 %v843
    %874 = vmatprep.subr.bf16.mxu0 0
    %875 = vmatpush1.bf16.msra.mxu0 %v842
    %876 = vmatprep.subr.bf16.mxu0 0
    %877 = vmatpush2.bf16.msra.mxu0 0
    %878 = vmatprep.subr.bf16.mxu0 0
    %879 = vmatpush2.bf16.msra.mxu0 0
    %880 = vmatprep.subr.bf16.mxu0 0
    %881 = vmatpush2.bf16.msra.mxu0 0
    %882 = vmatprep.subr.bf16.mxu0 0
    %883 = vmatpush2.bf16.msra.mxu0 0
    %884 = vmatprep.subr.bf16.mxu0 0
    %885 = vmatpush2.bf16.msra.mxu0 0
    %886 = vmatprep.subr.bf16.mxu0 0
    %887 = vmatpush2.bf16.msra.mxu0 0
    %888 = vmatprep.subr.bf16.mxu0 0
    %889 = vmatpush2.bf16.msra.mxu0 0
    %890 = vmatprep.subr.bf16.mxu0 0
    %891 = vmatpush2.bf16.msra.mxu0 0
    %892 = vmatprep.mubr.bf16.mxu0 0
    %893 = vmatmul.mubr.bf16.gmra.mxu0 %v854
    %v894 = vpop.f32.mrf.mxu0
    %v895 = vadd.f32 0.0, %v894
    %v896 = vpop.f32.mrf.mxu0
    %v897 = vpop.f32.mrf.mxu0
    %v898 = vadd.f32 0.0, %v897
    %v899 = vpop.f32.mrf.mxu0
    %900 = vdwg.mxu0
    %v912 = vunpack.c.l.b16 %v790
    %v913 = vunpack.c.l.b16 %v791
    %v914 = vunpack.c.l.b16 %v792
    %v915 = vunpack.c.l.b16 %v793
    %v916 = vunpack.c.l.b16 %v794
    %v917 = vunpack.c.l.b16 %v795
    %v918 = vunpack.c.l.b16 %v796
    %v919 = vunpack.c.l.b16 %v797
    %v920 = vunpack.c.l.b16 %v798
    %v921 = vunpack.c.l.b16 %v799
    %v922 = vunpack.c.l.b16 %v800
    %v923 = vpack.c.b16 %v913, %v912
    %v924 = vpack.c.b16 %v915, %v914
    %v925 = vpack.c.b16 %v917, %v916
    %v926 = vpack.c.b16 %v919, %v918
    %v927 = vpack.c.b16 %v921, %v920
    %v928 = vpack.c.b16 %v922, %v922
    %v934 = vsel %vm775, %v784, 0
    %v937 = vsel %vm856, %v928, 0
    %939 = vmatprep.subr.bf16.mxu0 0
    %940 = vmatpush1.bf16.msra.mxu0 0
    %941 = vmatprep.subr.bf16.mxu0 0
    %942 = vmatpush1.bf16.msra.mxu0 0
    %943 = vmatprep.subr.bf16.mxu0 0
    %944 = vmatpush1.bf16.msra.mxu0 %v937
    %945 = vmatprep.subr.bf16.mxu0 0
    %946 = vmatpush1.bf16.msra.mxu0 %v927
    %947 = vmatprep.subr.bf16.mxu0 0
    %948 = vmatpush1.bf16.msra.mxu0 %v926
    %949 = vmatprep.subr.bf16.mxu0 0
    %950 = vmatpush1.bf16.msra.mxu0 %v925
    %951 = vmatprep.subr.bf16.mxu0 0
    %952 = vmatpush1.bf16.msra.mxu0 %v924
    %953 = vmatprep.subr.bf16.mxu0 0
    %954 = vmatpush1.bf16.msra.mxu0 %v923
    %955 = vmatprep.subr.bf16.mxu0 0
    %956 = vmatpush2.bf16.msra.mxu0 0
    %957 = vmatprep.subr.bf16.mxu0 0
    %958 = vmatpush2.bf16.msra.mxu0 0
    %959 = vmatprep.subr.bf16.mxu0 0
    %960 = vmatpush2.bf16.msra.mxu0 0
    %961 = vmatprep.subr.bf16.mxu0 0
    %962 = vmatpush2.bf16.msra.mxu0 0
    %963 = vmatprep.subr.bf16.mxu0 0
    %964 = vmatpush2.bf16.msra.mxu0 0
    %965 = vmatprep.subr.bf16.mxu0 0
    %966 = vmatpush2.bf16.msra.mxu0 0
    %967 = vmatprep.subr.bf16.mxu0 0
    %968 = vmatpush2.bf16.msra.mxu0 0
    %969 = vmatprep.subr.bf16.mxu0 0
    %970 = vmatpush2.bf16.msra.mxu0 0
    %971 = vmatprep.mubr.bf16.mxu0 0
    %972 = vmatmul.mubr.bf16.gmra.mxu0 %v934
    %v973 = vpop.f32.mrf.mxu0
    %v974 = vadd.f32 %v895, %v973
    %v975 = vpop.f32.mrf.mxu0
    %v976 = vpop.f32.mrf.mxu0
    %v977 = vadd.f32 %v898, %v976
    %v978 = vpop.f32.mrf.mxu0
    %979 = vdwg.mxu0
    %s980 = scalar_lea.vmem %s4, 176
    %v981 = vld [vmem:[%s980] sm:$0xf]
    %v982 = vld [vmem:[%s980 + $0x4] sm:$0xf]
    %v983 = vld [vmem:[%s980 + $0x8] sm:$0xf]
    %v984 = vld [vmem:[%s980 + $0xc] sm:$0xf]
    %v985 = vld [vmem:[%s980 + $0x10] sm:$0xf]
    %v986 = vld [vmem:[%s980 + $0x14] sm:$0xf]
    %v987 = vld [vmem:[%s980 + $0x18] sm:$0xf]
    %v988 = vld [vmem:[%s980 + $0x1c] sm:$0xf]
    %v989 = vld [vmem:[%s980 + $0x20] sm:$0xf]
    %v990 = vld [vmem:[%s980 + $0x24] sm:$0xf]
    %v991 = vld [vmem:[%s980 + $0x28] sm:$0x3]
    %v993 = vrot.slane %v784, 1
    %v1005 = vunpack.c.l.b16 %v981
    %v1006 = vunpack.c.l.b16 %v982
    %v1007 = vunpack.c.l.b16 %v983
    %v1008 = vunpack.c.l.b16 %v984
    %v1009 = vunpack.c.l.b16 %v985
    %v1010 = vunpack.c.l.b16 %v986
    %v1011 = vunpack.c.l.b16 %v987
    %v1012 = vunpack.c.l.b16 %v988
    %v1013 = vunpack.c.l.b16 %v989
    %v1014 = vunpack.c.l.b16 %v990
    %v1015 = vunpack.c.l.b16 %v991
    %v1016 = vpack.c.b16 %v1006, %v1005
    %v1017 = vpack.c.b16 %v1008, %v1007
    %v1018 = vpack.c.b16 %v1010, %v1009
    %v1019 = vpack.c.b16 %v1012, %v1011
    %v1020 = vpack.c.b16 %v1014, %v1013
    %v1021 = vpack.c.b16 %v1015, %v1015
    %v1028 = vsel %vm775, %v993, 0
    %v1031 = vsel %vm856, %v1021, 0
    %1033 = vmatprep.subr.bf16.mxu0 0
    %1034 = vmatpush1.bf16.msra.mxu0 0
    %1035 = vmatprep.subr.bf16.mxu0 0
    %1036 = vmatpush1.bf16.msra.mxu0 0
    %1037 = vmatprep.subr.bf16.mxu0 0
    %1038 = vmatpush1.bf16.msra.mxu0 %v1031
    %1039 = vmatprep.subr.bf16.mxu0 0
    %1040 = vmatpush1.bf16.msra.mxu0 %v1020
    %1041 = vmatprep.subr.bf16.mxu0 0
    %1042 = vmatpush1.bf16.msra.mxu0 %v1019
    %1043 = vmatprep.subr.bf16.mxu0 0
    %1044 = vmatpush1.bf16.msra.mxu0 %v1018
    %1045 = vmatprep.subr.bf16.mxu0 0
    %1046 = vmatpush1.bf16.msra.mxu0 %v1017
    %1047 = vmatprep.subr.bf16.mxu0 0
    %1048 = vmatpush1.bf16.msra.mxu0 %v1016
    %1049 = vmatprep.subr.bf16.mxu0 0
    %1050 = vmatpush2.bf16.msra.mxu0 0
    %1051 = vmatprep.subr.bf16.mxu0 0
    %1052 = vmatpush2.bf16.msra.mxu0 0
    %1053 = vmatprep.subr.bf16.mxu0 0
    %1054 = vmatpush2.bf16.msra.mxu0 0
    %1055 = vmatprep.subr.bf16.mxu0 0
    %1056 = vmatpush2.bf16.msra.mxu0 0
    %1057 = vmatprep.subr.bf16.mxu0 0
    %1058 = vmatpush2.bf16.msra.mxu0 0
    %1059 = vmatprep.subr.bf16.mxu0 0
    %1060 = vmatpush2.bf16.msra.mxu0 0
    %1061 = vmatprep.subr.bf16.mxu0 0
    %1062 = vmatpush2.bf16.msra.mxu0 0
    %1063 = vmatprep.subr.bf16.mxu0 0
    %1064 = vmatpush2.bf16.msra.mxu0 0
    %1065 = vmatprep.mubr.bf16.mxu0 0
    %1066 = vmatmul.mubr.bf16.gmra.mxu0 %v1028
    %v1067 = vpop.f32.mrf.mxu0
    %v1068 = vadd.f32 0.0, %v1067
    %v1069 = vpop.f32.mrf.mxu0
    %v1070 = vpop.f32.mrf.mxu0
    %v1071 = vadd.f32 0.0, %v1070
    %v1072 = vpop.f32.mrf.mxu0
    %1073 = vdwg.mxu0
    %v1074 = vadd.f32 %v974, %v1068
    %v1075 = vadd.f32 %v977, %v1071
    %s1076 = scalar_lea.vmem %s4, 44
    %v1077 = vld [vmem:[%s1076] sm:$0xf]
    %v1078 = vld [vmem:[%s1076 + $0x4] sm:$0xf]
    %v1079 = vld [vmem:[%s1076 + $0x8] sm:$0xf]
    %v1080 = vld [vmem:[%s1076 + $0xc] sm:$0xf]
    %v1081 = vld [vmem:[%s1076 + $0x10] sm:$0xf]
    %v1082 = vld [vmem:[%s1076 + $0x14] sm:$0xf]
    %v1083 = vld [vmem:[%s1076 + $0x18] sm:$0xf]
    %v1084 = vld [vmem:[%s1076 + $0x1c] sm:$0xf]
    %v1085 = vld [vmem:[%s1076 + $0x20] sm:$0xf]
    %v1086 = vld [vmem:[%s1076 + $0x24] sm:$0xf]
    %v1087 = vld [vmem:[%s1076 + $0x28] sm:$0x3]
    %v1099 = vunpack.c.l.b16 %v1077
    %v1100 = vunpack.c.l.b16 %v1078
    %v1101 = vunpack.c.l.b16 %v1079
    %v1102 = vunpack.c.l.b16 %v1080
    %v1103 = vunpack.c.l.b16 %v1081
    %v1104 = vunpack.c.l.b16 %v1082
    %v1105 = vunpack.c.l.b16 %v1083
    %v1106 = vunpack.c.l.b16 %v1084
    %v1107 = vunpack.c.l.b16 %v1085
    %v1108 = vunpack.c.l.b16 %v1086
    %v1109 = vunpack.c.l.b16 %v1087
    %v1110 = vpack.c.b16 %v1100, %v1099
    %v1111 = vpack.c.b16 %v1102, %v1101
    %v1112 = vpack.c.b16 %v1104, %v1103
    %v1113 = vpack.c.b16 %v1106, %v1105
    %v1114 = vpack.c.b16 %v1108, %v1107
    %v1115 = vpack.c.b16 %v1109, %v1109
    %v1122 = vsel %vm775, %v789, 0
    %v1125 = vsel %vm856, %v1115, 0
    %1127 = vmatprep.subr.bf16.mxu0 0
    %1128 = vmatpush1.bf16.msra.mxu0 0
    %1129 = vmatprep.subr.bf16.mxu0 0
    %1130 = vmatpush1.bf16.msra.mxu0 0
    %1131 = vmatprep.subr.bf16.mxu0 0
    %1132 = vmatpush1.bf16.msra.mxu0 %v1125
    %1133 = vmatprep.subr.bf16.mxu0 0
    %1134 = vmatpush1.bf16.msra.mxu0 %v1114
    %1135 = vmatprep.subr.bf16.mxu0 0
    %1136 = vmatpush1.bf16.msra.mxu0 %v1113
    %1137 = vmatprep.subr.bf16.mxu0 0
    %1138 = vmatpush1.bf16.msra.mxu0 %v1112
    %1139 = vmatprep.subr.bf16.mxu0 0
    %1140 = vmatpush1.bf16.msra.mxu0 %v1111
    %1141 = vmatprep.subr.bf16.mxu0 0
    %1142 = vmatpush1.bf16.msra.mxu0 %v1110
    %1143 = vmatprep.subr.bf16.mxu0 0
    %1144 = vmatpush2.bf16.msra.mxu0 0
    %1145 = vmatprep.subr.bf16.mxu0 0
    %1146 = vmatpush2.bf16.msra.mxu0 0
    %1147 = vmatprep.subr.bf16.mxu0 0
    %1148 = vmatpush2.bf16.msra.mxu0 0
    %1149 = vmatprep.subr.bf16.mxu0 0
    %1150 = vmatpush2.bf16.msra.mxu0 0
    %1151 = vmatprep.subr.bf16.mxu0 0
    %1152 = vmatpush2.bf16.msra.mxu0 0
    %1153 = vmatprep.subr.bf16.mxu0 0
    %1154 = vmatpush2.bf16.msra.mxu0 0
    %1155 = vmatprep.subr.bf16.mxu0 0
    %1156 = vmatpush2.bf16.msra.mxu0 0
    %1157 = vmatprep.subr.bf16.mxu0 0
    %1158 = vmatpush2.bf16.msra.mxu0 0
    %1159 = vmatprep.mubr.bf16.mxu0 0
    %1160 = vmatmul.mubr.bf16.gmra.mxu0 %v1122
    %v1161 = vpop.f32.mrf.mxu0
    %v1162 = vadd.f32 0.0, %v1161
    %v1163 = vpop.f32.mrf.mxu0
    %v1164 = vpop.f32.mrf.mxu0
    %v1165 = vadd.f32 0.0, %v1164
    %v1166 = vpop.f32.mrf.mxu0
    %1167 = vdwg.mxu0
    %v1168 = vadd.f32 %v1074, %v1162
    %v1169 = vadd.f32 %v1075, %v1165
    %s1170 = scalar_lea.vmem %s4, 132
    %v1171 = vld [vmem:[%s1170] sm:$0xf]
    %v1172 = vld [vmem:[%s1170 + $0x4] sm:$0xf]
    %v1173 = vld [vmem:[%s1170 + $0x8] sm:$0xf]
    %v1174 = vld [vmem:[%s1170 + $0xc] sm:$0xf]
    %v1175 = vld [vmem:[%s1170 + $0x10] sm:$0xf]
    %v1176 = vld [vmem:[%s1170 + $0x14] sm:$0xf]
    %v1177 = vld [vmem:[%s1170 + $0x18] sm:$0xf]
    %v1178 = vld [vmem:[%s1170 + $0x1c] sm:$0xf]
    %v1179 = vld [vmem:[%s1170 + $0x20] sm:$0xf]
    %v1180 = vld [vmem:[%s1170 + $0x24] sm:$0xf]
    %v1181 = vld [vmem:[%s1170 + $0x28] sm:$0x3]
    %v1182 = vshrl.u32 %v789, 16
    %v1184 = vshll.u32 %v789, 16
    %v1186 = vrot.slane %v1184, 1
    %v1187 = vor.u32 %v1182, %v1186
    %v1199 = vunpack.c.l.b16 %v1171
    %v1200 = vunpack.c.l.b16 %v1172
    %v1201 = vunpack.c.l.b16 %v1173
    %v1202 = vunpack.c.l.b16 %v1174
    %v1203 = vunpack.c.l.b16 %v1175
    %v1204 = vunpack.c.l.b16 %v1176
    %v1205 = vunpack.c.l.b16 %v1177
    %v1206 = vunpack.c.l.b16 %v1178
    %v1207 = vunpack.c.l.b16 %v1179
    %v1208 = vunpack.c.l.b16 %v1180
    %v1209 = vunpack.c.l.b16 %v1181
    %v1210 = vpack.c.b16 %v1200, %v1199
    %v1211 = vpack.c.b16 %v1202, %v1201
    %v1212 = vpack.c.b16 %v1204, %v1203
    %v1213 = vpack.c.b16 %v1206, %v1205
    %v1214 = vpack.c.b16 %v1208, %v1207
    %v1215 = vpack.c.b16 %v1209, %v1209
    %v1222 = vsel %vm775, %v1187, 0
    %v1225 = vsel %vm856, %v1215, 0
    %1227 = vmatprep.subr.bf16.mxu0 0
    %1228 = vmatpush1.bf16.msra.mxu0 0
    %1229 = vmatprep.subr.bf16.mxu0 0
    %1230 = vmatpush1.bf16.msra.mxu0 0
    %1231 = vmatprep.subr.bf16.mxu0 0
    %1232 = vmatpush1.bf16.msra.mxu0 %v1225
    %1233 = vmatprep.subr.bf16.mxu0 0
    %1234 = vmatpush1.bf16.msra.mxu0 %v1214
    %1235 = vmatprep.subr.bf16.mxu0 0
    %1236 = vmatpush1.bf16.msra.mxu0 %v1213
    %1237 = vmatprep.subr.bf16.mxu0 0
    %1238 = vmatpush1.bf16.msra.mxu0 %v1212
    %1239 = vmatprep.subr.bf16.mxu0 0
    %1240 = vmatpush1.bf16.msra.mxu0 %v1211
    %1241 = vmatprep.subr.bf16.mxu0 0
    %1242 = vmatpush1.bf16.msra.mxu0 %v1210
    %1243 = vmatprep.subr.bf16.mxu0 0
    %1244 = vmatpush2.bf16.msra.mxu0 0
    %1245 = vmatprep.subr.bf16.mxu0 0
    %1246 = vmatpush2.bf16.msra.mxu0 0
    %1247 = vmatprep.subr.bf16.mxu0 0
    %1248 = vmatpush2.bf16.msra.mxu0 0
    %1249 = vmatprep.subr.bf16.mxu0 0
    %1250 = vmatpush2.bf16.msra.mxu0 0
    %1251 = vmatprep.subr.bf16.mxu0 0
    %1252 = vmatpush2.bf16.msra.mxu0 0
    %1253 = vmatprep.subr.bf16.mxu0 0
    %1254 = vmatpush2.bf16.msra.mxu0 0
    %1255 = vmatprep.subr.bf16.mxu0 0
    %1256 = vmatpush2.bf16.msra.mxu0 0
    %1257 = vmatprep.subr.bf16.mxu0 0
    %1258 = vmatpush2.bf16.msra.mxu0 0
    %1259 = vmatprep.mubr.bf16.mxu0 0
    %1260 = vmatmul.mubr.bf16.gmra.mxu0 %v1222
    %v1261 = vpop.f32.mrf.mxu0
    %v1262 = vadd.f32 0.0, %v1261
    %v1263 = vpop.f32.mrf.mxu0
    %v1264 = vpop.f32.mrf.mxu0
    %v1265 = vadd.f32 0.0, %v1264
    %v1266 = vpop.f32.mrf.mxu0
    %1267 = vdwg.mxu0
    %v1268 = vadd.f32 %v1168, %v1262
    %v1269 = vadd.f32 %v1169, %v1265
    %s1270 = scalar_lea.vmem %s4, 220
    %v1271 = vld [vmem:[%s1270] sm:$0xf]
    %v1272 = vld [vmem:[%s1270 + $0x4] sm:$0xf]
    %v1273 = vld [vmem:[%s1270 + $0x8] sm:$0xf]
    %v1274 = vld [vmem:[%s1270 + $0xc] sm:$0xf]
    %v1275 = vld [vmem:[%s1270 + $0x10] sm:$0xf]
    %v1276 = vld [vmem:[%s1270 + $0x14] sm:$0xf]
    %v1277 = vld [vmem:[%s1270 + $0x18] sm:$0xf]
    %v1278 = vld [vmem:[%s1270 + $0x1c] sm:$0xf]
    %v1279 = vld [vmem:[%s1270 + $0x20] sm:$0xf]
    %v1280 = vld [vmem:[%s1270 + $0x24] sm:$0xf]
    %v1281 = vld [vmem:[%s1270 + $0x28] sm:$0x3]
    %v1283 = vrot.slane %v789, 1
    %v1295 = vunpack.c.l.b16 %v1271
    %v1296 = vunpack.c.l.b16 %v1272
    %v1297 = vunpack.c.l.b16 %v1273
    %v1298 = vunpack.c.l.b16 %v1274
    %v1299 = vunpack.c.l.b16 %v1275
    %v1300 = vunpack.c.l.b16 %v1276
    %v1301 = vunpack.c.l.b16 %v1277
    %v1302 = vunpack.c.l.b16 %v1278
    %v1303 = vunpack.c.l.b16 %v1279
    %v1304 = vunpack.c.l.b16 %v1280
    %v1305 = vunpack.c.l.b16 %v1281
    %v1306 = vpack.c.b16 %v1296, %v1295
    %v1307 = vpack.c.b16 %v1298, %v1297
    %v1308 = vpack.c.b16 %v1300, %v1299
    %v1309 = vpack.c.b16 %v1302, %v1301
    %v1310 = vpack.c.b16 %v1304, %v1303
    %v1311 = vpack.c.b16 %v1305, %v1305
    %v1318 = vsel %vm775, %v1283, 0
    %v1321 = vsel %vm856, %v1311, 0
    %1323 = vmatprep.subr.bf16.mxu0 0
    %1324 = vmatpush1.bf16.msra.mxu0 0
    %1325 = vmatprep.subr.bf16.mxu0 0
    %1326 = vmatpush1.bf16.msra.mxu0 0
    %1327 = vmatprep.subr.bf16.mxu0 0
    %1328 = vmatpush1.bf16.msra.mxu0 %v1321
    %1329 = vmatprep.subr.bf16.mxu0 0
    %1330 = vmatpush1.bf16.msra.mxu0 %v1310
    %1331 = vmatprep.subr.bf16.mxu0 0
    %1332 = vmatpush1.bf16.msra.mxu0 %v1309
    %1333 = vmatprep.subr.bf16.mxu0 0
    %1334 = vmatpush1.bf16.msra.mxu0 %v1308
    %1335 = vmatprep.subr.bf16.mxu0 0
    %1336 = vmatpush1.bf16.msra.mxu0 %v1307
    %1337 = vmatprep.subr.bf16.mxu0 0
    %1338 = vmatpush1.bf16.msra.mxu0 %v1306
    %1339 = vmatprep.subr.bf16.mxu0 0
    %1340 = vmatpush2.bf16.msra.mxu0 0
    %1341 = vmatprep.subr.bf16.mxu0 0
    %1342 = vmatpush2.bf16.msra.mxu0 0
    %1343 = vmatprep.subr.bf16.mxu0 0
    %1344 = vmatpush2.bf16.msra.mxu0 0
    %1345 = vmatprep.subr.bf16.mxu0 0
    %1346 = vmatpush2.bf16.msra.mxu0 0
    %1347 = vmatprep.subr.bf16.mxu0 0
    %1348 = vmatpush2.bf16.msra.mxu0 0
    %1349 = vmatprep.subr.bf16.mxu0 0
    %1350 = vmatpush2.bf16.msra.mxu0 0
    %1351 = vmatprep.subr.bf16.mxu0 0
    %1352 = vmatpush2.bf16.msra.mxu0 0
    %1353 = vmatprep.subr.bf16.mxu0 0
    %1354 = vmatpush2.bf16.msra.mxu0 0
    %1355 = vmatprep.mubr.bf16.mxu0 0
    %1356 = vmatmul.mubr.bf16.gmra.mxu0 %v1318
    %v1357 = vpop.f32.mrf.mxu0
    %v1358 = vadd.f32 0.0, %v1357
    %v1359 = vpop.f32.mrf.mxu0
    %v1360 = vpop.f32.mrf.mxu0
    %v1361 = vadd.f32 0.0, %v1360
    %v1362 = vpop.f32.mrf.mxu0
    %1363 = vdwg.mxu0
    %v1364 = vadd.f32 %v1268, %v1358
    %v1365 = vadd.f32 %v1269, %v1361
    %vm1366 = vcmask 654336
    %1367 = vst.msk [vmem:[#allocation3] sm:$0xff] %vm1366, %v1364
    %vm1368 = vcmask 651264
    %1369 = vst.msk [vmem:[#allocation3 + $0x8] sm:$0x1f] %vm1368, %v1365
    %v1370 = vld [vmem:[%s6] sm:$0x1]
    %v1371 = vld [vmem:[#allocation3] ss:$8 sm:$0x3]
    %v1372 = vpack.c.bf16 %v1371, %v1371
    %v1373 = vld [vmem:[%s5] sm:$0xf]
    %v1374 = vld [vmem:[%s5 + $0x4] sm:$0xf]
    %v1375 = vld [vmem:[%s5 + $0x8] sm:$0xf]
    %v1376 = vld [vmem:[%s5 + $0xc] sm:$0xf]
    %v1377 = vld [vmem:[%s5 + $0x10] sm:$0xf]
    %v1378 = vld [vmem:[%s5 + $0x14] sm:$0xf]
    %v1379 = vld [vmem:[%s5 + $0x18] sm:$0xf]
    %v1380 = vld [vmem:[%s5 + $0x1c] sm:$0xf]
    %v1381 = vld [vmem:[%s5 + $0x20] sm:$0xf]
    %v1382 = vld [vmem:[%s5 + $0x24] sm:$0xf]
    %v1393 = vunpack.c.l.b16 %v1373
    %v1394 = vunpack.c.l.b16 %v1374
    %v1395 = vunpack.c.l.b16 %v1375
    %v1396 = vunpack.c.l.b16 %v1376
    %v1397 = vunpack.c.l.b16 %v1377
    %v1398 = vunpack.c.l.b16 %v1378
    %v1399 = vunpack.c.l.b16 %v1379
    %v1400 = vunpack.c.l.b16 %v1380
    %v1401 = vunpack.c.l.b16 %v1381
    %v1402 = vunpack.c.l.b16 %v1382
    %v1403 = vpack.c.b16 %v1394, %v1393
    %v1404 = vpack.c.b16 %v1396, %v1395
    %v1405 = vpack.c.b16 %v1398, %v1397
    %v1406 = vpack.c.b16 %v1400, %v1399
    %v1407 = vpack.c.b16 %v1402, %v1401
    %v1414 = vsel %vm1366, %v1372, 0
    %1416 = vmatprep.subr.bf16.mxu0 0
    %1417 = vmatpush1.bf16.msra.mxu0 0
    %1418 = vmatprep.subr.bf16.mxu0 0
    %1419 = vmatpush1.bf16.msra.mxu0 0
    %1420 = vmatprep.subr.bf16.mxu0 0
    %1421 = vmatpush1.bf16.msra.mxu0 0
    %1422 = vmatprep.subr.bf16.mxu0 0
    %1423 = vmatpush1.bf16.msra.mxu0 %v1407
    %1424 = vmatprep.subr.bf16.mxu0 0
    %1425 = vmatpush1.bf16.msra.mxu0 %v1406
    %1426 = vmatprep.subr.bf16.mxu0 0
    %1427 = vmatpush1.bf16.msra.mxu0 %v1405
    %1428 = vmatprep.subr.bf16.mxu0 0
    %1429 = vmatpush1.bf16.msra.mxu0 %v1404
    %1430 = vmatprep.subr.bf16.mxu0 0
    %1431 = vmatpush1.bf16.msra.mxu0 %v1403
    %1432 = vmatprep.subr.bf16.mxu0 0
    %1433 = vmatpush2.bf16.msra.mxu0 0
    %1434 = vmatprep.subr.bf16.mxu0 0
    %1435 = vmatpush2.bf16.msra.mxu0 0
    %1436 = vmatprep.subr.bf16.mxu0 0
    %1437 = vmatpush2.bf16.msra.mxu0 0
    %1438 = vmatprep.subr.bf16.mxu0 0
    %1439 = vmatpush2.bf16.msra.mxu0 0
    %1440 = vmatprep.subr.bf16.mxu0 0
    %1441 = vmatpush2.bf16.msra.mxu0 0
    %1442 = vmatprep.subr.bf16.mxu0 0
    %1443 = vmatpush2.bf16.msra.mxu0 0
    %1444 = vmatprep.subr.bf16.mxu0 0
    %1445 = vmatpush2.bf16.msra.mxu0 0
    %1446 = vmatprep.subr.bf16.mxu0 0
    %1447 = vmatpush2.bf16.msra.mxu0 0
    %1448 = vmatprep.mubr.bf16.mxu0 0
    %1449 = vmatmul.mubr.bf16.gmra.mxu0 %v1414
    %v1450 = vpop.f32.mrf.mxu0
    %v1451 = vadd.f32 0.0, %v1450
    %v1452 = vpop.f32.mrf.mxu0
    %v1453 = vpop.f32.mrf.mxu0
    %v1454 = vpop.f32.mrf.mxu0
    %1455 = vdwg.mxu0
    %v1457 = vlaneseq
    %v1458 = vshrl.u32 %v1457, 7
    %v1459 = vsub.s32 0, %v1458
    %v1460 = vrot.slane %v1370, %v1459
    %v1462 = vadd.f32 %v1460, %v1451
    %s1463 = scalar_lea.vmem [#allocation3], 1
    %v1464 = vld [vmem:[%s1463] ss:$8 sm:$0x3]
    %v1465 = vpack.c.bf16 %v1464, %v1464
    %s1466 = scalar_lea.vmem %s5, 40
    %v1467 = vld [vmem:[%s1466] sm:$0xf]
    %v1468 = vld [vmem:[%s1466 + $0x4] sm:$0xf]
    %v1469 = vld [vmem:[%s1466 + $0x8] sm:$0xf]
    %v1470 = vld [vmem:[%s1466 + $0xc] sm:$0xf]
    %v1471 = vld [vmem:[%s1466 + $0x10] sm:$0xf]
    %v1472 = vld [vmem:[%s1466 + $0x14] sm:$0xf]
    %v1473 = vld [vmem:[%s1466 + $0x18] sm:$0xf]
    %v1474 = vld [vmem:[%s1466 + $0x1c] sm:$0xf]
    %v1475 = vld [vmem:[%s1466 + $0x20] sm:$0xf]
    %v1476 = vld [vmem:[%s1466 + $0x24] sm:$0xf]
    %v1487 = vunpack.c.l.b16 %v1467
    %v1488 = vunpack.c.l.b16 %v1468
    %v1489 = vunpack.c.l.b16 %v1469
    %v1490 = vunpack.c.l.b16 %v1470
    %v1491 = vunpack.c.l.b16 %v1471
    %v1492 = vunpack.c.l.b16 %v1472
    %v1493 = vunpack.c.l.b16 %v1473
    %v1494 = vunpack.c.l.b16 %v1474
    %v1495 = vunpack.c.l.b16 %v1475
    %v1496 = vunpack.c.l.b16 %v1476
    %v1497 = vpack.c.b16 %v1488, %v1487
    %v1498 = vpack.c.b16 %v1490, %v1489
    %v1499 = vpack.c.b16 %v1492, %v1491
    %v1500 = vpack.c.b16 %v1494, %v1493
    %v1501 = vpack.c.b16 %v1496, %v1495
    %v1508 = vsel %vm1366, %v1465, 0
    %1510 = vmatprep.subr.bf16.mxu0 0
    %1511 = vmatpush1.bf16.msra.mxu0 0
    %1512 = vmatprep.subr.bf16.mxu0 0
    %1513 = vmatpush1.bf16.msra.mxu0 0
    %1514 = vmatprep.subr.bf16.mxu0 0
    %1515 = vmatpush1.bf16.msra.mxu0 0
    %1516 = vmatprep.subr.bf16.mxu0 0
    %1517 = vmatpush1.bf16.msra.mxu0 %v1501
    %1518 = vmatprep.subr.bf16.mxu0 0
    %1519 = vmatpush1.bf16.msra.mxu0 %v1500
    %1520 = vmatprep.subr.bf16.mxu0 0
    %1521 = vmatpush1.bf16.msra.mxu0 %v1499
    %1522 = vmatprep.subr.bf16.mxu0 0
    %1523 = vmatpush1.bf16.msra.mxu0 %v1498
    %1524 = vmatprep.subr.bf16.mxu0 0
    %1525 = vmatpush1.bf16.msra.mxu0 %v1497
    %1526 = vmatprep.subr.bf16.mxu0 0
    %1527 = vmatpush2.bf16.msra.mxu0 0
    %1528 = vmatprep.subr.bf16.mxu0 0
    %1529 = vmatpush2.bf16.msra.mxu0 0
    %1530 = vmatprep.subr.bf16.mxu0 0
    %1531 = vmatpush2.bf16.msra.mxu0 0
    %1532 = vmatprep.subr.bf16.mxu0 0
    %1533 = vmatpush2.bf16.msra.mxu0 0
    %1534 = vmatprep.subr.bf16.mxu0 0
    %1535 = vmatpush2.bf16.msra.mxu0 0
    %1536 = vmatprep.subr.bf16.mxu0 0
    %1537 = vmatpush2.bf16.msra.mxu0 0
    %1538 = vmatprep.subr.bf16.mxu0 0
    %1539 = vmatpush2.bf16.msra.mxu0 0
    %1540 = vmatprep.subr.bf16.mxu0 0
    %1541 = vmatpush2.bf16.msra.mxu0 0
    %1542 = vmatprep.mubr.bf16.mxu0 0
    %1543 = vmatmul.mubr.bf16.gmra.mxu0 %v1508
    %v1544 = vpop.f32.mrf.mxu0
    %v1545 = vadd.f32 0.0, %v1544
    %v1546 = vpop.f32.mrf.mxu0
    %v1547 = vpop.f32.mrf.mxu0
    %v1548 = vpop.f32.mrf.mxu0
    %1549 = vdwg.mxu0
    %v1550 = vadd.f32 %v1462, %v1545
    %s1551 = scalar_lea.vmem [#allocation3], 2
    %v1552 = vld [vmem:[%s1551] ss:$8 sm:$0x3]
    %v1553 = vpack.c.bf16 %v1552, %v1552
    %s1554 = scalar_lea.vmem %s5, 80
    %v1555 = vld [vmem:[%s1554] sm:$0xf]
    %v1556 = vld [vmem:[%s1554 + $0x4] sm:$0xf]
    %v1557 = vld [vmem:[%s1554 + $0x8] sm:$0xf]
    %v1558 = vld [vmem:[%s1554 + $0xc] sm:$0xf]
    %v1559 = vld [vmem:[%s1554 + $0x10] sm:$0xf]
    %v1560 = vld [vmem:[%s1554 + $0x14] sm:$0xf]
    %v1561 = vld [vmem:[%s1554 + $0x18] sm:$0xf]
    %v1562 = vld [vmem:[%s1554 + $0x1c] sm:$0xf]
    %v1563 = vld [vmem:[%s1554 + $0x20] sm:$0xf]
    %v1564 = vld [vmem:[%s1554 + $0x24] sm:$0xf]
    %v1575 = vunpack.c.l.b16 %v1555
    %v1576 = vunpack.c.l.b16 %v1556
    %v1577 = vunpack.c.l.b16 %v1557
    %v1578 = vunpack.c.l.b16 %v1558
    %v1579 = vunpack.c.l.b16 %v1559
    %v1580 = vunpack.c.l.b16 %v1560
    %v1581 = vunpack.c.l.b16 %v1561
    %v1582 = vunpack.c.l.b16 %v1562
    %v1583 = vunpack.c.l.b16 %v1563
    %v1584 = vunpack.c.l.b16 %v1564
    %v1585 = vpack.c.b16 %v1576, %v1575
    %v1586 = vpack.c.b16 %v1578, %v1577
    %v1587 = vpack.c.b16 %v1580, %v1579
    %v1588 = vpack.c.b16 %v1582, %v1581
    %v1589 = vpack.c.b16 %v1584, %v1583
    %v1596 = vsel %vm1366, %v1553, 0
    %1598 = vmatprep.subr.bf16.mxu0 0
    %1599 = vmatpush1.bf16.msra.mxu0 0
    %1600 = vmatprep.subr.bf16.mxu0 0
    %1601 = vmatpush1.bf16.msra.mxu0 0
    %1602 = vmatprep.subr.bf16.mxu0 0
    %1603 = vmatpush1.bf16.msra.mxu0 0
    %1604 = vmatprep.subr.bf16.mxu0 0
    %1605 = vmatpush1.bf16.msra.mxu0 %v1589
    %1606 = vmatprep.subr.bf16.mxu0 0
    %1607 = vmatpush1.bf16.msra.mxu0 %v1588
    %1608 = vmatprep.subr.bf16.mxu0 0
    %1609 = vmatpush1.bf16.msra.mxu0 %v1587
    %1610 = vmatprep.subr.bf16.mxu0 0
    %1611 = vmatpush1.bf16.msra.mxu0 %v1586
    %1612 = vmatprep.subr.bf16.mxu0 0
    %1613 = vmatpush1.bf16.msra.mxu0 %v1585
    %1614 = vmatprep.subr.bf16.mxu0 0
    %1615 = vmatpush2.bf16.msra.mxu0 0
    %1616 = vmatprep.subr.bf16.mxu0 0
    %1617 = vmatpush2.bf16.msra.mxu0 0
    %1618 = vmatprep.subr.bf16.mxu0 0
    %1619 = vmatpush2.bf16.msra.mxu0 0
    %1620 = vmatprep.subr.bf16.mxu0 0
    %1621 = vmatpush2.bf16.msra.mxu0 0
    %1622 = vmatprep.subr.bf16.mxu0 0
    %1623 = vmatpush2.bf16.msra.mxu0 0
    %1624 = vmatprep.subr.bf16.mxu0 0
    %1625 = vmatpush2.bf16.msra.mxu0 0
    %1626 = vmatprep.subr.bf16.mxu0 0
    %1627 = vmatpush2.bf16.msra.mxu0 0
    %1628 = vmatprep.subr.bf16.mxu0 0
    %1629 = vmatpush2.bf16.msra.mxu0 0
    %1630 = vmatprep.mubr.bf16.mxu0 0
    %1631 = vmatmul.mubr.bf16.gmra.mxu0 %v1596
    %v1632 = vpop.f32.mrf.mxu0
    %v1633 = vadd.f32 0.0, %v1632
    %v1634 = vpop.f32.mrf.mxu0
    %v1635 = vpop.f32.mrf.mxu0
    %v1636 = vpop.f32.mrf.mxu0
    %1637 = vdwg.mxu0
    %v1638 = vadd.f32 %v1550, %v1633
    %s1639 = scalar_lea.vmem [#allocation3], 3
    %v1640 = vld [vmem:[%s1639] ss:$8 sm:$0x3]
    %v1641 = vpack.c.bf16 %v1640, %v1640
    %s1642 = scalar_lea.vmem %s5, 120
    %v1643 = vld [vmem:[%s1642] sm:$0xf]
    %v1644 = vld [vmem:[%s1642 + $0x4] sm:$0xf]
    %v1645 = vld [vmem:[%s1642 + $0x8] sm:$0xf]
    %v1646 = vld [vmem:[%s1642 + $0xc] sm:$0xf]
    %v1647 = vld [vmem:[%s1642 + $0x10] sm:$0xf]
    %v1648 = vld [vmem:[%s1642 + $0x14] sm:$0xf]
    %v1649 = vld [vmem:[%s1642 + $0x18] sm:$0xf]
    %v1650 = vld [vmem:[%s1642 + $0x1c] sm:$0xf]
    %v1651 = vld [vmem:[%s1642 + $0x20] sm:$0xf]
    %v1652 = vld [vmem:[%s1642 + $0x24] sm:$0xf]
    %v1663 = vunpack.c.l.b16 %v1643
    %v1664 = vunpack.c.l.b16 %v1644
    %v1665 = vunpack.c.l.b16 %v1645
    %v1666 = vunpack.c.l.b16 %v1646
    %v1667 = vunpack.c.l.b16 %v1647
    %v1668 = vunpack.c.l.b16 %v1648
    %v1669 = vunpack.c.l.b16 %v1649
    %v1670 = vunpack.c.l.b16 %v1650
    %v1671 = vunpack.c.l.b16 %v1651
    %v1672 = vunpack.c.l.b16 %v1652
    %v1673 = vpack.c.b16 %v1664, %v1663
    %v1674 = vpack.c.b16 %v1666, %v1665
    %v1675 = vpack.c.b16 %v1668, %v1667
    %v1676 = vpack.c.b16 %v1670, %v1669
    %v1677 = vpack.c.b16 %v1672, %v1671
    %v1684 = vsel %vm1366, %v1641, 0
    %1686 = vmatprep.subr.bf16.mxu0 0
    %1687 = vmatpush1.bf16.msra.mxu0 0
    %1688 = vmatprep.subr.bf16.mxu0 0
    %1689 = vmatpush1.bf16.msra.mxu0 0
    %1690 = vmatprep.subr.bf16.mxu0 0
    %1691 = vmatpush1.bf16.msra.mxu0 0
    %1692 = vmatprep.subr.bf16.mxu0 0
    %1693 = vmatpush1.bf16.msra.mxu0 %v1677
    %1694 = vmatprep.subr.bf16.mxu0 0
    %1695 = vmatpush1.bf16.msra.mxu0 %v1676
    %1696 = vmatprep.subr.bf16.mxu0 0
    %1697 = vmatpush1.bf16.msra.mxu0 %v1675
    %1698 = vmatprep.subr.bf16.mxu0 0
    %1699 = vmatpush1.bf16.msra.mxu0 %v1674
    %1700 = vmatprep.subr.bf16.mxu0 0
    %1701 = vmatpush1.bf16.msra.mxu0 %v1673
    %1702 = vmatprep.subr.bf16.mxu0 0
    %1703 = vmatpush2.bf16.msra.mxu0 0
    %1704 = vmatprep.subr.bf16.mxu0 0
    %1705 = vmatpush2.bf16.msra.mxu0 0
    %1706 = vmatprep.subr.bf16.mxu0 0
    %1707 = vmatpush2.bf16.msra.mxu0 0
    %1708 = vmatprep.subr.bf16.mxu0 0
    %1709 = vmatpush2.bf16.msra.mxu0 0
    %1710 = vmatprep.subr.bf16.mxu0 0
    %1711 = vmatpush2.bf16.msra.mxu0 0
    %1712 = vmatprep.subr.bf16.mxu0 0
    %1713 = vmatpush2.bf16.msra.mxu0 0
    %1714 = vmatprep.subr.bf16.mxu0 0
    %1715 = vmatpush2.bf16.msra.mxu0 0
    %1716 = vmatprep.subr.bf16.mxu0 0
    %1717 = vmatpush2.bf16.msra.mxu0 0
    %1718 = vmatprep.mubr.bf16.mxu0 0
    %1719 = vmatmul.mubr.bf16.gmra.mxu0 %v1684
    %v1720 = vpop.f32.mrf.mxu0
    %v1721 = vadd.f32 0.0, %v1720
    %v1722 = vpop.f32.mrf.mxu0
    %v1723 = vpop.f32.mrf.mxu0
    %v1724 = vpop.f32.mrf.mxu0
    %1725 = vdwg.mxu0
    %v1726 = vadd.f32 %v1638, %v1721
    %s1727 = scalar_lea.vmem [#allocation3], 4
    %v1728 = vld [vmem:[%s1727] ss:$8 sm:$0x3]
    %v1729 = vpack.c.bf16 %v1728, %v1728
    %s1730 = scalar_lea.vmem %s5, 160
    %v1731 = vld [vmem:[%s1730] sm:$0xf]
    %v1732 = vld [vmem:[%s1730 + $0x4] sm:$0xf]
    %v1733 = vld [vmem:[%s1730 + $0x8] sm:$0xf]
    %v1734 = vld [vmem:[%s1730 + $0xc] sm:$0xf]
    %v1735 = vld [vmem:[%s1730 + $0x10] sm:$0xf]
    %v1736 = vld [vmem:[%s1730 + $0x14] sm:$0xf]
    %v1737 = vld [vmem:[%s1730 + $0x18] sm:$0xf]
    %v1738 = vld [vmem:[%s1730 + $0x1c] sm:$0xf]
    %v1739 = vld [vmem:[%s1730 + $0x20] sm:$0xf]
    %v1740 = vld [vmem:[%s1730 + $0x24] sm:$0xf]
    %v1751 = vunpack.c.l.b16 %v1731
    %v1752 = vunpack.c.l.b16 %v1732
    %v1753 = vunpack.c.l.b16 %v1733
    %v1754 = vunpack.c.l.b16 %v1734
    %v1755 = vunpack.c.l.b16 %v1735
    %v1756 = vunpack.c.l.b16 %v1736
    %v1757 = vunpack.c.l.b16 %v1737
    %v1758 = vunpack.c.l.b16 %v1738
    %v1759 = vunpack.c.l.b16 %v1739
    %v1760 = vunpack.c.l.b16 %v1740
    %v1761 = vpack.c.b16 %v1752, %v1751
    %v1762 = vpack.c.b16 %v1754, %v1753
    %v1763 = vpack.c.b16 %v1756, %v1755
    %v1764 = vpack.c.b16 %v1758, %v1757
    %v1765 = vpack.c.b16 %v1760, %v1759
    %v1772 = vsel %vm1366, %v1729, 0
    %1774 = vmatprep.subr.bf16.mxu0 0
    %1775 = vmatpush1.bf16.msra.mxu0 0
    %1776 = vmatprep.subr.bf16.mxu0 0
    %1777 = vmatpush1.bf16.msra.mxu0 0
    %1778 = vmatprep.subr.bf16.mxu0 0
    %1779 = vmatpush1.bf16.msra.mxu0 0
    %1780 = vmatprep.subr.bf16.mxu0 0
    %1781 = vmatpush1.bf16.msra.mxu0 %v1765
    %1782 = vmatprep.subr.bf16.mxu0 0
    %1783 = vmatpush1.bf16.msra.mxu0 %v1764
    %1784 = vmatprep.subr.bf16.mxu0 0
    %1785 = vmatpush1.bf16.msra.mxu0 %v1763
    %1786 = vmatprep.subr.bf16.mxu0 0
    %1787 = vmatpush1.bf16.msra.mxu0 %v1762
    %1788 = vmatprep.subr.bf16.mxu0 0
    %1789 = vmatpush1.bf16.msra.mxu0 %v1761
    %1790 = vmatprep.subr.bf16.mxu0 0
    %1791 = vmatpush2.bf16.msra.mxu0 0
    %1792 = vmatprep.subr.bf16.mxu0 0
    %1793 = vmatpush2.bf16.msra.mxu0 0
    %1794 = vmatprep.subr.bf16.mxu0 0
    %1795 = vmatpush2.bf16.msra.mxu0 0
    %1796 = vmatprep.subr.bf16.mxu0 0
    %1797 = vmatpush2.bf16.msra.mxu0 0
    %1798 = vmatprep.subr.bf16.mxu0 0
    %1799 = vmatpush2.bf16.msra.mxu0 0
    %1800 = vmatprep.subr.bf16.mxu0 0
    %1801 = vmatpush2.bf16.msra.mxu0 0
    %1802 = vmatprep.subr.bf16.mxu0 0
    %1803 = vmatpush2.bf16.msra.mxu0 0
    %1804 = vmatprep.subr.bf16.mxu0 0
    %1805 = vmatpush2.bf16.msra.mxu0 0
    %1806 = vmatprep.mubr.bf16.mxu0 0
    %1807 = vmatmul.mubr.bf16.gmra.mxu0 %v1772
    %v1808 = vpop.f32.mrf.mxu0
    %v1809 = vadd.f32 0.0, %v1808
    %v1810 = vpop.f32.mrf.mxu0
    %v1811 = vpop.f32.mrf.mxu0
    %v1812 = vpop.f32.mrf.mxu0
    %1813 = vdwg.mxu0
    %v1814 = vadd.f32 %v1726, %v1809
    %v1815 = vmax.f32 %v1814, 0.0
    %v1816 = vpack.c.bf16 %v1815, %v1815
    %v1817 = vld [vmem:[%s7] sm:$0xf]
    %v1818 = vld [vmem:[%s7 + $0x4] sm:$0xf]
    %v1819 = vld [vmem:[%s7 + $0x8] sm:$0xf]
    %v1820 = vld [vmem:[%s7 + $0xc] sm:$0xf]
    %v1821 = vld [vmem:[%s7 + $0x10] sm:$0xf]
    %v1822 = vld [vmem:[%s7 + $0x14] sm:$0xf]
    %v1823 = vld [vmem:[%s7 + $0x18] sm:$0xf]
    %v1824 = vld [vmem:[%s7 + $0x1c] sm:$0xf]
    %v1825 = vld [vmem:[%s7 + $0x20] sm:$0xf]
    %v1826 = vld [vmem:[%s7 + $0x24] sm:$0xf]
    %v1827 = vld [vmem:[%s7 + $0x28] sm:$0xf]
    %v1828 = vld [vmem:[%s7 + $0x2c] sm:$0xf]
    %v1829 = vld [vmem:[%s7 + $0x30] sm:$0xf]
    %v1830 = vld [vmem:[%s7 + $0x34] sm:$0xf]
    %v1831 = vld [vmem:[%s7 + $0x38] sm:$0xf]
    %v1832 = vld [vmem:[%s8] sm:$0x1]
    %v1834 = vlaneseq
    %v1835 = vshrl.u32 %v1834, 7
    %v1836 = vsub.s32 0, %v1835
    %v1837 = vrot.slane %v1832, %v1836
    %v1854 = vunpack.c.l.b16 %v1817
    %v1855 = vunpack.c.l.b16 %v1818
    %v1856 = vunpack.c.l.b16 %v1819
    %v1857 = vunpack.c.l.b16 %v1820
    %v1858 = vunpack.c.l.b16 %v1821
    %v1859 = vunpack.c.l.b16 %v1822
    %v1860 = vunpack.c.l.b16 %v1823
    %v1861 = vunpack.c.l.b16 %v1824
    %v1862 = vunpack.c.l.b16 %v1825
    %v1863 = vunpack.c.l.b16 %v1826
    %v1864 = vunpack.c.l.b16 %v1827
    %v1865 = vunpack.c.l.b16 %v1828
    %v1866 = vunpack.c.l.b16 %v1829
    %v1867 = vunpack.c.l.b16 %v1830
    %v1868 = vunpack.c.l.b16 %v1831
    %v1869 = vpack.c.b16 %v1855, %v1854
    %v1870 = vpack.c.b16 %v1857, %v1856
    %v1871 = vpack.c.b16 %v1859, %v1858
    %v1872 = vpack.c.b16 %v1861, %v1860
    %v1873 = vpack.c.b16 %v1863, %v1862
    %v1874 = vpack.c.b16 %v1865, %v1864
    %v1875 = vpack.c.b16 %v1867, %v1866
    %v1876 = vpack.c.b16 %v1868, %v1868
    %vm1884 = vcmask 982016
    %v1886 = vsel %vm1884, %v1816, 0
    %vm1888 = vcmask 1043456
    %v1890 = vsel %vm1888, %v1876, 0
    %1892 = vmatprep.subr.bf16.mxu0 0
    %1893 = vmatpush1.bf16.msra.mxu0 %v1890
    %1894 = vmatprep.subr.bf16.mxu0 0
    %1895 = vmatpush1.bf16.msra.mxu0 %v1875
    %1896 = vmatprep.subr.bf16.mxu0 0
    %1897 = vmatpush1.bf16.msra.mxu0 %v1874
    %1898 = vmatprep.subr.bf16.mxu0 0
    %1899 = vmatpush1.bf16.msra.mxu0 %v1873
    %1900 = vmatprep.subr.bf16.mxu0 0
    %1901 = vmatpush1.bf16.msra.mxu0 %v1872
    %1902 = vmatprep.subr.bf16.mxu0 0
    %1903 = vmatpush1.bf16.msra.mxu0 %v1871
    %1904 = vmatprep.subr.bf16.mxu0 0
    %1905 = vmatpush1.bf16.msra.mxu0 %v1870
    %1906 = vmatprep.subr.bf16.mxu0 0
    %1907 = vmatpush1.bf16.msra.mxu0 %v1869
    %1908 = vmatprep.subr.bf16.mxu0 0
    %1909 = vmatpush2.bf16.msra.mxu0 0
    %1910 = vmatprep.subr.bf16.mxu0 0
    %1911 = vmatpush2.bf16.msra.mxu0 0
    %1912 = vmatprep.subr.bf16.mxu0 0
    %1913 = vmatpush2.bf16.msra.mxu0 0
    %1914 = vmatprep.subr.bf16.mxu0 0
    %1915 = vmatpush2.bf16.msra.mxu0 0
    %1916 = vmatprep.subr.bf16.mxu0 0
    %1917 = vmatpush2.bf16.msra.mxu0 0
    %1918 = vmatprep.subr.bf16.mxu0 0
    %1919 = vmatpush2.bf16.msra.mxu0 0
    %1920 = vmatprep.subr.bf16.mxu0 0
    %1921 = vmatpush2.bf16.msra.mxu0 0
    %1922 = vmatprep.subr.bf16.mxu0 0
    %1923 = vmatpush2.bf16.msra.mxu0 0
    %1924 = vmatprep.mubr.bf16.mxu0 0
    %1925 = vmatmul.mubr.bf16.gmra.mxu0 %v1886
    %v1926 = vpop.f32.mrf.mxu0
    %v1927 = vadd.f32 %v1837, %v1926
    %v1928 = vpop.f32.mrf.mxu0
    %v1929 = vpop.f32.mrf.mxu0
    %v1930 = vpop.f32.mrf.mxu0
    %1931 = vdwg.mxu0
    %v1932 = vmax.f32 %v1927, 0.0
    %v1933 = vpack.c.bf16 %v1932, %v1932
    %v1934 = vld [vmem:[%s9] sm:$0xf]
    %v1935 = vld [vmem:[%s9 + $0x4] sm:$0xf]
    %v1936 = vld [vmem:[%s9 + $0x8] sm:$0xf]
    %v1937 = vld [vmem:[%s9 + $0xc] sm:$0xf]
    %v1938 = vld [vmem:[%s9 + $0x10] sm:$0xf]
    %v1939 = vld [vmem:[%s9 + $0x14] sm:$0xf]
    %v1940 = vld [vmem:[%s9 + $0x18] sm:$0xf]
    %v1941 = vld [vmem:[%s9 + $0x1c] sm:$0xf]
    %v1942 = vld [vmem:[%s9 + $0x20] sm:$0xf]
    %v1943 = vld [vmem:[%s9 + $0x24] sm:$0xf]
    %v1944 = vld [vmem:[%s9 + $0x28] sm:$0x3]
    %v1945 = vld [vmem:[%s10] sm:$0x1]
    %v1947 = vlaneseq
    %v1948 = vshrl.u32 %v1947, 7
    %v1949 = vsub.s32 0, %v1948
    %v1950 = vrot.slane %v1945, %v1949
    %v1963 = vunpack.c.l.b16 %v1934
    %v1964 = vunpack.c.l.b16 %v1935
    %v1965 = vunpack.c.l.b16 %v1936
    %v1966 = vunpack.c.l.b16 %v1937
    %v1967 = vunpack.c.l.b16 %v1938
    %v1968 = vunpack.c.l.b16 %v1939
    %v1969 = vunpack.c.l.b16 %v1940
    %v1970 = vunpack.c.l.b16 %v1941
    %v1971 = vunpack.c.l.b16 %v1942
    %v1972 = vunpack.c.l.b16 %v1943
    %v1973 = vunpack.c.l.b16 %v1944
    %v1974 = vpack.c.b16 %v1964, %v1963
    %v1975 = vpack.c.b16 %v1966, %v1965
    %v1976 = vpack.c.b16 %v1968, %v1967
    %v1977 = vpack.c.b16 %v1970, %v1969
    %v1978 = vpack.c.b16 %v1972, %v1971
    %v1979 = vpack.c.b16 %v1973, %v1973
    %v1986 = vsel %vm775, %v1933, 0
    %v1989 = vsel %vm856, %v1979, 0
    %1991 = vmatprep.subr.bf16.mxu0 0
    %1992 = vmatpush1.bf16.msra.mxu0 0
    %1993 = vmatprep.subr.bf16.mxu0 0
    %1994 = vmatpush1.bf16.msra.mxu0 0
    %1995 = vmatprep.subr.bf16.mxu0 0
    %1996 = vmatpush1.bf16.msra.mxu0 %v1989
    %1997 = vmatprep.subr.bf16.mxu0 0
    %1998 = vmatpush1.bf16.msra.mxu0 %v1978
    %1999 = vmatprep.subr.bf16.mxu0 0
    %2000 = vmatpush1.bf16.msra.mxu0 %v1977
    %2001 = vmatprep.subr.bf16.mxu0 0
    %2002 = vmatpush1.bf16.msra.mxu0 %v1976
    %2003 = vmatprep.subr.bf16.mxu0 0
    %2004 = vmatpush1.bf16.msra.mxu0 %v1975
    %2005 = vmatprep.subr.bf16.mxu0 0
    %2006 = vmatpush1.bf16.msra.mxu0 %v1974
    %2007 = vmatprep.subr.bf16.mxu0 0
    %2008 = vmatpush2.bf16.msra.mxu0 0
    %2009 = vmatprep.subr.bf16.mxu0 0
    %2010 = vmatpush2.bf16.msra.mxu0 0
    %2011 = vmatprep.subr.bf16.mxu0 0
    %2012 = vmatpush2.bf16.msra.mxu0 0
    %2013 = vmatprep.subr.bf16.mxu0 0
    %2014 = vmatpush2.bf16.msra.mxu0 0
    %2015 = vmatprep.subr.bf16.mxu0 0
    %2016 = vmatpush2.bf16.msra.mxu0 0
    %2017 = vmatprep.subr.bf16.mxu0 0
    %2018 = vmatpush2.bf16.msra.mxu0 0
    %2019 = vmatprep.subr.bf16.mxu0 0
    %2020 = vmatpush2.bf16.msra.mxu0 0
    %2021 = vmatprep.subr.bf16.mxu0 0
    %2022 = vmatpush2.bf16.msra.mxu0 0
    %2023 = vmatprep.mubr.bf16.mxu0 0
    %2024 = vmatmul.mubr.bf16.gmra.mxu0 %v1986
    %v2025 = vpop.f32.mrf.mxu0
    %v2026 = vadd.f32 %v1950, %v2025
    %v2027 = vpop.f32.mrf.mxu0
    %v2028 = vpop.f32.mrf.mxu0
    %v2029 = vpop.f32.mrf.mxu0
    %2030 = vdwg.mxu0
    %2031 = vst [vmem:[#allocation4] sm:$0x3] %v2026
    // Predicated region
    $region46: #{lenet5_forward.1} parent=1 // pred_check
      _
    $region47: #{lenet5_forward.1} parent=1 // pred_check_branch
      %2033 = sbr.rel (0) target = $region49
    $region48: #{lenet5_forward.1} parent=1 // pred_region
      %s2035 = ssub.s32 32, 32
      %2036 = vsyncadd [#allocation5], %s2035
      %s2038 = sshll.u32 [#allocation4], 4
      %s2039 = int_to_ptr.vmem [resolvable:$true] %s2038
      %2041 = dma.vmem_to_hbm [thread:$0]  %s2039, 32, %s11, [#allocation5]
    $region49: #{lenet5_forward.1} parent=1 // pred_fallthru
      _
    // Predicated region
    $region50: #{lenet5_forward.1} parent=1 // pred_check
      _
    $region51: #{lenet5_forward.1} parent=1 // pred_check_branch
      %2043 = sbr.rel (0) target = $region53
    $region52: #{lenet5_forward.1} parent=1 // pred_region
      %2044 = dma.done [#allocation5], 32
    $region53: #{lenet5_forward.1} parent=1 // pred_fallthru
      _
    %2045 = vsyncpa [#allocation5], 1

</llo_original>
